<compile_context>
chip_gen: v6e
topology: v6e:2x2x1
jax: 0.10.0
libtpu: 0.0.40
codegen_flags: <defaults>
</compile_context>

<pallas_src>
import functools

import jax
import jax.numpy as jnp
from jax.experimental import pallas as pl
from jax.experimental.pallas import tpu as pltpu


def _round_up(n, m):
    return ((n + m - 1) // m) * m


# ---------------------------------------------------------------------------
# Kernels
# ---------------------------------------------------------------------------

def _chunk_partial(tanh_ref, mole_ref, deno_ref, x_chunk, i_start, ic, *,
                   mole_order, deno_order, exact_div):
    """Partial (O, tb) output slab contributed by one chunk of input features.

    x_chunk: (ic, tb) f32 tile of the ORIGINAL inputs (features x batch).
    mole_ref/deno_ref: VMEM-resident (orders, O, I) coefficient refs.
    """
    r = tanh_ref[0]                                   # SMEM scalar
    t = jnp.tanh(x_chunk * r)                         # (ic, tb)
    t3 = t[None, :, :]                                # (1, ic, tb)
    x3 = x_chunk[None, :, :]                          # (1, ic, tb)

    def coef(ref, k):
        # Per-order coefficient plane for this chunk: (O, ic).
        if ic == ref.shape[-1]:
            c = ref[k]
        else:
            c = ref[k, :, pl.ds(i_start, ic)]         # 128-aligned lane slice
        # Trailing singleton -> lane-broadcast inside the FMA.
        return c.astype(jnp.float32)[:, :, None]      # (O, ic, 1)

    # Horner: num[j, i, b] = sum_k mole[k, j, i] * t[i, b]**k
    num = coef(mole_ref, mole_order)
    for k in range(mole_order - 1, -1, -1):
        num = num * t3 + coef(mole_ref, k)            # (O, ic, tb)

    # Horner: den[j, i, b] = sum_k deno[k, j, i] * t[i, b]**(k+1)
    den = coef(deno_ref, deno_order - 1)
    for k in range(deno_order - 2, -1, -1):
        den = den * t3 + coef(deno_ref, k)
    den = den * t3                                    # (O, ic, tb)

    denom = jnp.abs(den * x3) + 1.0                   # (O, ic, tb), always >= 1
    if exact_div:
        transformed = num / denom
    else:
        # EUP approx reciprocal + one Newton step: keeps the divide off the
        # VALU (the binding unit of this kernel); rel. error ~1e-7.
        rcp = pl.reciprocal(denom, approx=True)
        rcp = rcp * (2.0 - denom * rcp)
        transformed = num * rcp                       # (O, ic, tb)

    # Reduce this chunk's input features: ic/8 VPU vreg adds per output row
    # plus one XLU sublane reduce (separate slot from the VALU Horner chain).
    return jnp.sum(transformed, axis=1)               # (O, tb)


def _rational_kernel_single(tanh_ref, mole_ref, deno_ref, xT_ref, outT_ref, *,
                            mole_order, deno_order, exact_div):
    """grid = (B // tb,): the whole input-feature axis in one chunk."""
    x_chunk = xT_ref[...].astype(jnp.float32)         # (I, tb)
    part = _chunk_partial(tanh_ref, mole_ref, deno_ref, x_chunk, 0,
                          xT_ref.shape[0], mole_order=mole_order,
                          deno_order=deno_order, exact_div=exact_div)
    outT_ref[...] = part.astype(outT_ref.dtype)


def _rational_kernel_multi(tanh_ref, mole_ref, deno_ref, xT_ref, outT_ref, acc_ref, *,
                           ic, mole_order, deno_order, exact_div):
    """grid = (B // tb [parallel], I // ic [arbitrary]).

    NOTE: the (O, tb) accumulator is only correct because the batch axis is the
    OUTER grid axis and the input-chunk (reduction) axis is LAST + 'arbitrary';
    do not reorder the grid or mark the reduction axis 'parallel'.
    """
    i = pl.program_id(1)

    @pl.when(i == 0)
    def _():
        acc_ref[...] = jnp.zeros_like(acc_ref)

    i_start = pl.multiple_of(i * ic, 128)
    x_chunk = xT_ref[...].astype(jnp.float32)         # (ic, tb)
    acc_ref[...] += _chunk_partial(tanh_ref, mole_ref, deno_ref, x_chunk, i_start,
                                   ic, mole_order=mole_order,
                                   deno_order=deno_order, exact_div=exact_div)

    @pl.when(i == pl.num_programs(1) - 1)
    def _():
        outT_ref[...] = acc_ref[...].astype(outT_ref.dtype)


# ---------------------------------------------------------------------------
# Tiling heuristics
# ---------------------------------------------------------------------------

def _pick_batch_tile(B):
    # Prefer lane-dense tiles while keeping >= 2 steps on the 'parallel' batch
    # axis (so both v7x TensorCores get work); fall back to the largest tile.
    for cand in (1024, 512, 256, 128):
        if B % cand == 0 and B // cand >= 2:
            return cand
    for cand in (1024, 512, 256, 128):
        if B % cand == 0:
            return cand
    # TODO(synk): B not a multiple of 128 -> single full-B tile (no batch grid).
    return B


def _pick_input_chunk(in_size, out_size, tb, budget_bytes=256 << 10):
    """Largest input-feature chunk whose (O, ic, tb) f32 temporaries stay small
    (~vreg-file scale) so the kernel stays VALU-bound, not vld/vst-bound."""
    if in_size * out_size * tb * 4 <= budget_bytes:
        return in_size
    if in_size % 128 != 0:
        # TODO(synk): chunking requires 128-aligned lane slices of the resident
        # coefficients; odd in_size falls back to a single chunk.
        return in_size
    for mult in range(in_size // 128, 0, -1):
        c = mult * 128
        if in_size % c == 0 and c * out_size * tb * 4 <= budget_bytes:
            return c
    return 128


# ---------------------------------------------------------------------------
# Layer / network wrappers
# ---------------------------------------------------------------------------

def custom_rational_layer_t(xT, tanh_arr, mole_t, deno_t, *, tb=None, ic=None,
                            exact_div=False):
    """One CustomRationalLayer in the transposed layout.

    xT:       (I, B)        original inputs, features x batch
    tanh_arr: (1,) float32  tanh_range scalar (lives in SMEM)
    mole_t:   (M+1, O, I)   numerator coefficients
    deno_t:   (D,   O, I)   denominator coefficients, D >= 1
    returns   (O, B)
    """
    in_size, B = xT.shape
    mp1, out_size, in2 = mole_t.shape
    assert in2 == in_size
    deno_order = deno_t.shape[0]
    mole_order = mp1 - 1
    # TODO(synk): deno_order == 0 (empty denominator polynomial) is unsupported.
    assert deno_order >= 1

    if tb is None:
        tb = _pick_batch_tile(B)
    assert B % tb == 0 and (tb == B or tb % 128 == 0)
    if ic is None:
        ic = _pick_input_chunk(in_size, out_size, tb)
    assert in_size % ic == 0 and (ic == in_size or ic % 128 == 0)
    n_b, n_ic = B // tb, in_size // ic

    # VMEM budget: resident coefficients (x2 pipeline buffers), x/out tiles,
    # accumulator, and the (O, ic, tb) f32 temporaries of the Horner chain.
    coef_bytes = (mp1 + deno_order) * _round_up(out_size, 8) * _round_up(in_size, 128) * 4
    tile_bytes = (2 * _round_up(ic, 8) * tb + 3 * _round_up(out_size, 8) * tb
                  + 8 * out_size * _round_up(ic, 8) * tb) * 4
    est = 2 * coef_bytes + tile_bytes
    try:
        cap = pltpu.get_tpu_info().vmem_capacity_bytes   # 128 MiB v5e/v6e, 64 MiB v7x
    except Exception:
        cap = None
    vmem_limit = max(32 << 20, 2 * est)
    if cap is not None:
        vmem_limit = min(vmem_limit, cap * 3 // 4)       # ~25% headroom for Mosaic
    # TODO(synk): very wide layers whose resident coefficients exceed this budget
    # would need a chunked-coefficient fallback (blocking along I).

    if n_ic == 1:
        kernel = functools.partial(_rational_kernel_single, mole_order=mole_order,
                                   deno_order=deno_order, exact_div=exact_div)
        grid = (n_b,)
        in_specs = [
            pl.BlockSpec(memory_space=pltpu.MemorySpace.SMEM),                # tanh_range (1,)
            pl.BlockSpec((mp1, out_size, in_size), lambda b: (0, 0, 0)),      # resident coefs
            pl.BlockSpec((deno_order, out_size, in_size), lambda b: (0, 0, 0)),
            pl.BlockSpec((in_size, tb), lambda b: (0, b)),                    # x tile (I, tb)
        ]
        out_spec = pl.BlockSpec((out_size, tb), lambda b: (0, b))             # lane-dense (O, tb)
        scratch = []
        dims = ("parallel",)
    else:
        kernel = functools.partial(_rational_kernel_multi, ic=ic, mole_order=mole_order,
                                   deno_order=deno_order, exact_div=exact_div)
        grid = (n_b, n_ic)
        in_specs = [
            pl.BlockSpec(memory_space=pltpu.MemorySpace.SMEM),
            pl.BlockSpec((mp1, out_size, in_size), lambda b, i: (0, 0, 0)),   # constant index
            pl.BlockSpec((deno_order, out_size, in_size), lambda b, i: (0, 0, 0)),
            pl.BlockSpec((ic, tb), lambda b, i: (i, b)),
        ]
        out_spec = pl.BlockSpec((out_size, tb), lambda b, i: (0, b))
        scratch = [pltpu.VMEM((out_size, tb), jnp.float32)]
        dims = ("parallel", "arbitrary")   # reduction (input-chunk) axis stays last

    return pl.pallas_call(
        kernel,
        out_shape=jax.ShapeDtypeStruct((out_size, B), xT.dtype),
        grid_spec=pltpu.PrefetchScalarGridSpec(
            num_scalar_prefetch=0,
            grid=grid,
            in_specs=in_specs,
            out_specs=out_spec,
            scratch_shapes=scratch),
        compiler_params=pltpu.CompilerParams(
            dimension_semantics=dims,
            vmem_limit_bytes=int(vmem_limit)),
    )(tanh_arr, mole_t, deno_t, xT)


def rational_kan_forward(x, params, **kw):
    """RationalKAN forward.  x: (B, I0); params: list of
    (tanh_range, mole_coef (O,I,M+1), deno_coef (O,I,D)) per layer (PyTorch layout)."""
    xT = jnp.transpose(x)                             # transpose once at network entry
    for tanh_range, mole_coef, deno_coef in params:
        mole_t = jnp.transpose(mole_coef, (2, 0, 1))  # (M+1, O, I)
        deno_t = jnp.transpose(deno_coef, (2, 0, 1))  # (D,   O, I)
        tanh_arr = jnp.asarray(tanh_range, jnp.float32).reshape(1)
        xT = custom_rational_layer_t(xT, tanh_arr, mole_t, deno_t, **kw)
    return jnp.transpose(xT)                          # transpose once at network exit


def custom_rational_layer(x, tanh_range, mole_coef, deno_coef, **kw):
    """Single layer in the original (B, I) -> (B, O) layout."""
    return rational_kan_forward(x, [(tanh_range, mole_coef, deno_coef)], **kw)


# ---------------------------------------------------------------------------
# Pure-JAX reference (transcription of the PyTorch forward) and demo
# ---------------------------------------------------------------------------

def _reference_layer(x, tanh_range, mole_coef, deno_coef):
    mole_order = mole_coef.shape[2] - 1
    deno_order = deno_coef.shape[2]
    t = jnp.tanh(x * tanh_range)
    num = max(mole_order, deno_order)
    pows = jnp.stack([t ** k for k in range(num + 1)], axis=2)    # (B, I, num+1)
    mole_vals = pows[:, :, :mole_order + 1]
    deno_vals = pows[:, :, 1:deno_order + 1]
    num_v = jnp.einsum('jik,bik->bji', mole_coef, mole_vals)      # (B, O, I)
    den_v = jnp.einsum('jik,bik->bji', deno_coef, deno_vals)      # (B, O, I)
    transformed = num_v / (jnp.abs(den_v * x[:, None, :]) + 1.0)
    return jnp.sum(transformed, axis=2)                           # (B, O)


def _reference_kan(x, params):
    for tanh_range, mole_coef, deno_coef in params:
        x = _reference_layer(x, tanh_range, mole_coef, deno_coef)
    return x


if __name__ == "__main__":
    # RationalKAN(layer_sizes=[16, 8, 4], mole_order=3, deno_order=2), batch=256.
    B = 256
    layer_sizes = [16, 8, 4]
    M, D = 3, 2

    key = jax.random.PRNGKey(0)
    params = []
    for li in range(1, len(layer_sizes)):
        I, O = layer_sizes[li - 1], layer_sizes[li]
        key, km, kd = jax.random.split(key, 3)
        mole_coef = jax.random.normal(km, (O, I, M + 1), dtype=jnp.float32) * 0.1
        deno_coef = jax.random.normal(kd, (O, I, D), dtype=jnp.float32) * 0.1
        params.append((jnp.float32(1.0), mole_coef, deno_coef))

    key, kx = jax.random.split(key)
    x = jax.random.normal(kx, (B, layer_sizes[0]), dtype=jnp.float32)

    fwd = jax.jit(rational_kan_forward)
    out = jax.block_until_ready(fwd(x, params))

    ref = _reference_kan(x, params)
    assert out.shape == (B, layer_sizes[-1])
    assert jnp.allclose(out, ref, atol=1e-4, rtol=1e-4), "Pallas kernel mismatch vs reference"

    print("KERNEL_OK")
</pallas_src>

<mosaic_0001>
module attributes {stable_mosaic.version = 11 : i64} {
  func.func @_rational_kernel_single(%arg0: i32, %arg1: memref<1xf32, #tpu.memory_space<smem>>, %arg2: memref<4x8x16xf32, #tpu.memory_space<vmem>>, %arg3: memref<2x8x16xf32, #tpu.memory_space<vmem>>, %arg4: memref<16x128xf32, #tpu.memory_space<vmem>>, %arg5: memref<8x128xf32, #tpu.memory_space<vmem>>) attributes {dimension_semantics = [#tpu.dimension_semantics<parallel>], iteration_bounds = array<i64: 2>, scalar_prefetch = 0 : i64, scratch_operands = 0 : i64, tpu.core_type = #tpu.core_type<tc>, window_params = [{transform_indices = @transform_0, window_bounds = array<i64: 1>}, {pipeline_mode = #tpu.pipeline_mode<synchronous>, transform_indices = @transform_1, window_bounds = array<i64: 4, 8, 16>}, {pipeline_mode = #tpu.pipeline_mode<synchronous>, transform_indices = @transform_2, window_bounds = array<i64: 2, 8, 16>}, {transform_indices = @transform_3, window_bounds = array<i64: 16, 128>}, {transform_indices = @transform_4, window_bounds = array<i64: 8, 128>}]} {
    %c0 = arith.constant 0 : index
    %c0_0 = arith.constant 0 : index
    %0 = vector.load %arg4[%c0, %c0_0] : memref<16x128xf32, #tpu.memory_space<vmem>>, vector<16x128xf32>
    %c0_1 = arith.constant 0 : index
    %1 = memref.load %arg1[%c0_1] : memref<1xf32, #tpu.memory_space<smem>>
    %2 = vector.broadcast %1 : f32 to vector<16x128xf32>
    %3 = arith.mulf %0, %2 : vector<16x128xf32>
    %4 = math.tanh %3 : vector<16x128xf32>
    %5 = vector.shape_cast %4 : vector<16x128xf32> to vector<1x16x128xf32>
    %6 = vector.shape_cast %0 : vector<16x128xf32> to vector<1x16x128xf32>
    %c3 = arith.constant 3 : index
    %c0_2 = arith.constant 0 : index
    %c0_3 = arith.constant 0 : index
    %7 = vector.load %arg2[%c3, %c0_2, %c0_3] : memref<4x8x16xf32, #tpu.memory_space<vmem>>, vector<1x8x16xf32>
    %8 = vector.shape_cast %7 : vector<1x8x16xf32> to vector<8x16xf32>
    %9 = vector.shape_cast %8 : vector<8x16xf32> to vector<8x16x1xf32>
    %10 = vector.broadcast %9 : vector<8x16x1xf32> to vector<8x16x128xf32>
    %11 = vector.broadcast %5 : vector<1x16x128xf32> to vector<8x16x128xf32>
    %12 = arith.mulf %10, %11 : vector<8x16x128xf32>
    %c2 = arith.constant 2 : index
    %c0_4 = arith.constant 0 : index
    %c0_5 = arith.constant 0 : index
    %13 = vector.load %arg2[%c2, %c0_4, %c0_5] : memref<4x8x16xf32, #tpu.memory_space<vmem>>, vector<1x8x16xf32>
    %14 = vector.shape_cast %13 : vector<1x8x16xf32> to vector<8x16xf32>
    %15 = vector.shape_cast %14 : vector<8x16xf32> to vector<8x16x1xf32>
    %16 = vector.broadcast %15 : vector<8x16x1xf32> to vector<8x16x128xf32>
    %17 = arith.addf %12, %16 : vector<8x16x128xf32>
    %18 = vector.broadcast %5 : vector<1x16x128xf32> to vector<8x16x128xf32>
    %19 = arith.mulf %17, %18 : vector<8x16x128xf32>
    %c1 = arith.constant 1 : index
    %c0_6 = arith.constant 0 : index
    %c0_7 = arith.constant 0 : index
    %20 = vector.load %arg2[%c1, %c0_6, %c0_7] : memref<4x8x16xf32, #tpu.memory_space<vmem>>, vector<1x8x16xf32>
    %21 = vector.shape_cast %20 : vector<1x8x16xf32> to vector<8x16xf32>
    %22 = vector.shape_cast %21 : vector<8x16xf32> to vector<8x16x1xf32>
    %23 = vector.broadcast %22 : vector<8x16x1xf32> to vector<8x16x128xf32>
    %24 = arith.addf %19, %23 : vector<8x16x128xf32>
    %25 = vector.broadcast %5 : vector<1x16x128xf32> to vector<8x16x128xf32>
    %26 = arith.mulf %24, %25 : vector<8x16x128xf32>
    %c0_8 = arith.constant 0 : index
    %c0_9 = arith.constant 0 : index
    %c0_10 = arith.constant 0 : index
    %27 = vector.load %arg2[%c0_8, %c0_9, %c0_10] : memref<4x8x16xf32, #tpu.memory_space<vmem>>, vector<1x8x16xf32>
    %28 = vector.shape_cast %27 : vector<1x8x16xf32> to vector<8x16xf32>
    %29 = vector.shape_cast %28 : vector<8x16xf32> to vector<8x16x1xf32>
    %30 = vector.broadcast %29 : vector<8x16x1xf32> to vector<8x16x128xf32>
    %31 = arith.addf %26, %30 : vector<8x16x128xf32>
    %c1_11 = arith.constant 1 : index
    %c0_12 = arith.constant 0 : index
    %c0_13 = arith.constant 0 : index
    %32 = vector.load %arg3[%c1_11, %c0_12, %c0_13] : memref<2x8x16xf32, #tpu.memory_space<vmem>>, vector<1x8x16xf32>
    %33 = vector.shape_cast %32 : vector<1x8x16xf32> to vector<8x16xf32>
    %34 = vector.shape_cast %33 : vector<8x16xf32> to vector<8x16x1xf32>
    %35 = vector.broadcast %34 : vector<8x16x1xf32> to vector<8x16x128xf32>
    %36 = vector.broadcast %5 : vector<1x16x128xf32> to vector<8x16x128xf32>
    %37 = arith.mulf %35, %36 : vector<8x16x128xf32>
    %c0_14 = arith.constant 0 : index
    %c0_15 = arith.constant 0 : index
    %c0_16 = arith.constant 0 : index
    %38 = vector.load %arg3[%c0_14, %c0_15, %c0_16] : memref<2x8x16xf32, #tpu.memory_space<vmem>>, vector<1x8x16xf32>
    %39 = vector.shape_cast %38 : vector<1x8x16xf32> to vector<8x16xf32>
    %40 = vector.shape_cast %39 : vector<8x16xf32> to vector<8x16x1xf32>
    %41 = vector.broadcast %40 : vector<8x16x1xf32> to vector<8x16x128xf32>
    %42 = arith.addf %37, %41 : vector<8x16x128xf32>
    %43 = vector.broadcast %5 : vector<1x16x128xf32> to vector<8x16x128xf32>
    %44 = arith.mulf %42, %43 : vector<8x16x128xf32>
    %45 = vector.broadcast %6 : vector<1x16x128xf32> to vector<8x16x128xf32>
    %46 = arith.mulf %44, %45 : vector<8x16x128xf32>
    %47 = math.absf %46 : vector<8x16x128xf32>
    %cst = arith.constant 1.000000e+00 : f32
    %48 = vector.broadcast %cst : f32 to vector<8x16x128xf32>
    %49 = arith.addf %47, %48 : vector<8x16x128xf32>
    %50 = tpu.reciprocal %49 {approx = true} : vector<8x16x128xf32> -> vector<8x16x128xf32>
    %51 = arith.mulf %49, %50 : vector<8x16x128xf32>
    %cst_17 = arith.constant 2.000000e+00 : f32
    %52 = vector.broadcast %cst_17 : f32 to vector<8x16x128xf32>
    %53 = arith.subf %52, %51 : vector<8x16x128xf32>
    %54 = arith.mulf %50, %53 : vector<8x16x128xf32>
    %55 = arith.mulf %31, %54 : vector<8x16x128xf32>
    %cst_18 = arith.constant dense<0.000000e+00> : vector<8x128xf32>
    %56 = vector.multi_reduction <add>, %55, %cst_18 [1] : vector<8x16x128xf32> to vector<8x128xf32>
    %c0_19 = arith.constant 0 : index
    %c0_20 = arith.constant 0 : index
    %57 = vector.load %arg5[%c0_19, %c0_20] : memref<8x128xf32, #tpu.memory_space<vmem>>, vector<8x128xf32>
    tpu.vector_store %arg5[%c0_19, %c0_20], %56 {strides = array<i32>} : memref<8x128xf32, #tpu.memory_space<vmem>>, vector<8x128xf32>,
    return
  }
  func.func @transform_0(%arg0: i32) -> i32 {
    %c0_i32 = arith.constant 0 : i32
    %c0_i32_0 = arith.constant 0 : i32
    return %c0_i32 : i32
  }
  func.func @transform_1(%arg0: i32) -> (i32, i32, i32) {
    %c0_i32 = arith.constant 0 : i32
    %c0_i32_0 = arith.constant 0 : i32
    %c0_i32_1 = arith.constant 0 : i32
    %c0_i32_2 = arith.constant 0 : i32
    return %c0_i32, %c0_i32_0, %c0_i32_1 : i32, i32, i32
  }
  func.func @transform_2(%arg0: i32) -> (i32, i32, i32) {
    %c0_i32 = arith.constant 0 : i32
    %c0_i32_0 = arith.constant 0 : i32
    %c0_i32_1 = arith.constant 0 : i32
    %c0_i32_2 = arith.constant 0 : i32
    return %c0_i32, %c0_i32_0, %c0_i32_1 : i32, i32, i32
  }
  func.func @transform_3(%arg0: i32) -> (i32, i32) {
    %c0_i32 = arith.constant 0 : i32
    %c0_i32_0 = arith.constant 0 : i32
    return %c0_i32, %arg0 : i32, i32
  }
  func.func @transform_4(%arg0: i32) -> (i32, i32) {
    %c0_i32 = arith.constant 0 : i32
    %c0_i32_0 = arith.constant 0 : i32
    return %c0_i32, %arg0 : i32, i32
  }
}

module attributes {stable_mosaic.version = 11 : i64} {
  func.func @_rational_kernel_single(%arg0: i32, %arg1: memref<1xf32, #tpu.memory_space<smem>>, %arg2: memref<4x4x8xf32, #tpu.memory_space<vmem>>, %arg3: memref<2x4x8xf32, #tpu.memory_space<vmem>>, %arg4: memref<8x128xf32, #tpu.memory_space<vmem>>, %arg5: memref<4x128xf32, #tpu.memory_space<vmem>>) attributes {dimension_semantics = [#tpu.dimension_semantics<parallel>], iteration_bounds = array<i64: 2>, scalar_prefetch = 0 : i64, scratch_operands = 0 : i64, tpu.core_type = #tpu.core_type<tc>, window_params = [{transform_indices = @transform_0, window_bounds = array<i64: 1>}, {pipeline_mode = #tpu.pipeline_mode<synchronous>, transform_indices = @transform_1, window_bounds = array<i64: 4, 4, 8>}, {pipeline_mode = #tpu.pipeline_mode<synchronous>, transform_indices = @transform_2, window_bounds = array<i64: 2, 4, 8>}, {transform_indices = @transform_3, window_bounds = array<i64: 8, 128>}, {transform_indices = @transform_4, window_bounds = array<i64: 4, 128>}]} {
    %c0 = arith.constant 0 : index
    %c0_0 = arith.constant 0 : index
    %0 = vector.load %arg4[%c0, %c0_0] : memref<8x128xf32, #tpu.memory_space<vmem>>, vector<8x128xf32>
    %c0_1 = arith.constant 0 : index
    %1 = memref.load %arg1[%c0_1] : memref<1xf32, #tpu.memory_space<smem>>
    %2 = vector.broadcast %1 : f32 to vector<8x128xf32>
    %3 = arith.mulf %0, %2 : vector<8x128xf32>
    %4 = math.tanh %3 : vector<8x128xf32>
    %5 = vector.shape_cast %4 : vector<8x128xf32> to vector<1x8x128xf32>
    %6 = vector.shape_cast %0 : vector<8x128xf32> to vector<1x8x128xf32>
    %c3 = arith.constant 3 : index
    %c0_2 = arith.constant 0 : index
    %c0_3 = arith.constant 0 : index
    %7 = vector.load %arg2[%c3, %c0_2, %c0_3] : memref<4x4x8xf32, #tpu.memory_space<vmem>>, vector<1x4x8xf32>
    %8 = vector.shape_cast %7 : vector<1x4x8xf32> to vector<4x8xf32>
    %9 = vector.shape_cast %8 : vector<4x8xf32> to vector<4x8x1xf32>
    %10 = vector.broadcast %9 : vector<4x8x1xf32> to vector<4x8x128xf32>
    %11 = vector.broadcast %5 : vector<1x8x128xf32> to vector<4x8x128xf32>
    %12 = arith.mulf %10, %11 : vector<4x8x128xf32>
    %c2 = arith.constant 2 : index
    %c0_4 = arith.constant 0 : index
    %c0_5 = arith.constant 0 : index
    %13 = vector.load %arg2[%c2, %c0_4, %c0_5] : memref<4x4x8xf32, #tpu.memory_space<vmem>>, vector<1x4x8xf32>
    %14 = vector.shape_cast %13 : vector<1x4x8xf32> to vector<4x8xf32>
    %15 = vector.shape_cast %14 : vector<4x8xf32> to vector<4x8x1xf32>
    %16 = vector.broadcast %15 : vector<4x8x1xf32> to vector<4x8x128xf32>
    %17 = arith.addf %12, %16 : vector<4x8x128xf32>
    %18 = vector.broadcast %5 : vector<1x8x128xf32> to vector<4x8x128xf32>
    %19 = arith.mulf %17, %18 : vector<4x8x128xf32>
    %c1 = arith.constant 1 : index
    %c0_6 = arith.constant 0 : index
    %c0_7 = arith.constant 0 : index
    %20 = vector.load %arg2[%c1, %c0_6, %c0_7] : memref<4x4x8xf32, #tpu.memory_space<vmem>>, vector<1x4x8xf32>
    %21 = vector.shape_cast %20 : vector<1x4x8xf32> to vector<4x8xf32>
    %22 = vector.shape_cast %21 : vector<4x8xf32> to vector<4x8x1xf32>
    %23 = vector.broadcast %22 : vector<4x8x1xf32> to vector<4x8x128xf32>
    %24 = arith.addf %19, %23 : vector<4x8x128xf32>
    %25 = vector.broadcast %5 : vector<1x8x128xf32> to vector<4x8x128xf32>
    %26 = arith.mulf %24, %25 : vector<4x8x128xf32>
    %c0_8 = arith.constant 0 : index
    %c0_9 = arith.constant 0 : index
    %c0_10 = arith.constant 0 : index
    %27 = vector.load %arg2[%c0_8, %c0_9, %c0_10] : memref<4x4x8xf32, #tpu.memory_space<vmem>>, vector<1x4x8xf32>
    %28 = vector.shape_cast %27 : vector<1x4x8xf32> to vector<4x8xf32>
    %29 = vector.shape_cast %28 : vector<4x8xf32> to vector<4x8x1xf32>
    %30 = vector.broadcast %29 : vector<4x8x1xf32> to vector<4x8x128xf32>
    %31 = arith.addf %26, %30 : vector<4x8x128xf32>
    %c1_11 = arith.constant 1 : index
    %c0_12 = arith.constant 0 : index
    %c0_13 = arith.constant 0 : index
    %32 = vector.load %arg3[%c1_11, %c0_12, %c0_13] : memref<2x4x8xf32, #tpu.memory_space<vmem>>, vector<1x4x8xf32>
    %33 = vector.shape_cast %32 : vector<1x4x8xf32> to vector<4x8xf32>
    %34 = vector.shape_cast %33 : vector<4x8xf32> to vector<4x8x1xf32>
    %35 = vector.broadcast %34 : vector<4x8x1xf32> to vector<4x8x128xf32>
    %36 = vector.broadcast %5 : vector<1x8x128xf32> to vector<4x8x128xf32>
    %37 = arith.mulf %35, %36 : vector<4x8x128xf32>
    %c0_14 = arith.constant 0 : index
    %c0_15 = arith.constant 0 : index
    %c0_16 = arith.constant 0 : index
    %38 = vector.load %arg3[%c0_14, %c0_15, %c0_16] : memref<2x4x8xf32, #tpu.memory_space<vmem>>, vector<1x4x8xf32>
    %39 = vector.shape_cast %38 : vector<1x4x8xf32> to vector<4x8xf32>
    %40 = vector.shape_cast %39 : vector<4x8xf32> to vector<4x8x1xf32>
    %41 = vector.broadcast %40 : vector<4x8x1xf32> to vector<4x8x128xf32>
    %42 = arith.addf %37, %41 : vector<4x8x128xf32>
    %43 = vector.broadcast %5 : vector<1x8x128xf32> to vector<4x8x128xf32>
    %44 = arith.mulf %42, %43 : vector<4x8x128xf32>
    %45 = vector.broadcast %6 : vector<1x8x128xf32> to vector<4x8x128xf32>
    %46 = arith.mulf %44, %45 : vector<4x8x128xf32>
    %47 = math.absf %46 : vector<4x8x128xf32>
    %cst = arith.constant 1.000000e+00 : f32
    %48 = vector.broadcast %cst : f32 to vector<4x8x128xf32>
    %49 = arith.addf %47, %48 : vector<4x8x128xf32>
    %50 = tpu.reciprocal %49 {approx = true} : vector<4x8x128xf32> -> vector<4x8x128xf32>
    %51 = arith.mulf %49, %50 : vector<4x8x128xf32>
    %cst_17 = arith.constant 2.000000e+00 : f32
    %52 = vector.broadcast %cst_17 : f32 to vector<4x8x128xf32>
    %53 = arith.subf %52, %51 : vector<4x8x128xf32>
    %54 = arith.mulf %50, %53 : vector<4x8x128xf32>
    %55 = arith.mulf %31, %54 : vector<4x8x128xf32>
    %cst_18 = arith.constant dense<0.000000e+00> : vector<4x128xf32>
    %56 = vector.multi_reduction <add>, %55, %cst_18 [1] : vector<4x8x128xf32> to vector<4x128xf32>
    %c0_19 = arith.constant 0 : index
    %c0_20 = arith.constant 0 : index
    %57 = vector.load %arg5[%c0_19, %c0_20] : memref<4x128xf32, #tpu.memory_space<vmem>>, vector<4x128xf32>
    tpu.vector_store %arg5[%c0_19, %c0_20], %56 {strides = array<i32>} : memref<4x128xf32, #tpu.memory_space<vmem>>, vector<4x128xf32>,
    return
  }
  func.func @transform_0(%arg0: i32) -> i32 {
    %c0_i32 = arith.constant 0 : i32
    %c0_i32_0 = arith.constant 0 : i32
    return %c0_i32 : i32
  }
  func.func @transform_1(%arg0: i32) -> (i32, i32, i32) {
    %c0_i32 = arith.constant 0 : i32
    %c0_i32_0 = arith.constant 0 : i32
    %c0_i32_1 = arith.constant 0 : i32
    %c0_i32_2 = arith.constant 0 : i32
    return %c0_i32, %c0_i32_0, %c0_i32_1 : i32, i32, i32
  }
  func.func @transform_2(%arg0: i32) -> (i32, i32, i32) {
    %c0_i32 = arith.constant 0 : i32
    %c0_i32_0 = arith.constant 0 : i32
    %c0_i32_1 = arith.constant 0 : i32
    %c0_i32_2 = arith.constant 0 : i32
    return %c0_i32, %c0_i32_0, %c0_i32_1 : i32, i32, i32
  }
  func.func @transform_3(%arg0: i32) -> (i32, i32) {
    %c0_i32 = arith.constant 0 : i32
    %c0_i32_0 = arith.constant 0 : i32
    return %c0_i32, %arg0 : i32, i32
  }
  func.func @transform_4(%arg0: i32) -> (i32, i32) {
    %c0_i32 = arith.constant 0 : i32
    %c0_i32_0 = arith.constant 0 : i32
    return %c0_i32, %arg0 : i32, i32
  }
}

</mosaic_0001>

<llo_original>
// kernel: rational_kan_forward.3
$region0: #{rational_kan_forward.3}
  #allocation0 [shape = 'u32[]', space=smem, size = 0x4, offset = 0x4, fixed_abs, tag = 'smem constant byte address 0x4 - core index']
  #allocation1 [shape = 'u32[144,128]{1,0:T(1,128)}', space=vmem, size = 0x12000, scoped, tag = 'internal scratch']
  #allocation2 [shape = 'f32[1]{0:T(128)S(6)}', space=smem, size = 0x200, scoped, tag = 'scoped memory for rational_kan_forward.3']
  %s0 = inlined_call_operand.<no memory space> [shape: f32[1], index: 0, kind: input, shape index: {}]
  %s1 = inlined_call_operand.vmem [shape: f32[4,4,8], index: 1, kind: input, shape index: {}]
  %s2 = inlined_call_operand.vmem [shape: f32[2,4,8], index: 2, kind: input, shape index: {}]
  %s3 = inlined_call_operand.vmem [shape: f32[8,256], index: 3, kind: input, shape index: {}]
  %s4 = inlined_call_operand.hbm [shape: f32[4,256], index: 4, kind: output, shape index: {}]
  %s5 = sld [smem:[#allocation0]]
  $region49: #{rational_kan_forward.3} parent=0
    _
  %s7 = ssub.s32 1, %s5
  %s8 = scalar_select 0, %s7, %s5
  %9 = sst [smem:[#allocation2]] %s0
  $region1: #{rational_kan_forward.3} parent=0
    #allocation3 [shape = 'u8[4096]{0}', space=vmem, size = 0x1000, scoped, tag = 'output window, operand 0']
    #allocation4 [shape = 's32[2]{0}', space=sflag, size = 0x8, scoped, tag = 'scoped memory for rational_kan_forward.3']
    %10 = vsyncpa [#allocation4], 0
    %s11 = scalar_lea.sflag [#allocation4], 1
    %12 = vsyncpa %s11, 0
    loop: start=0, step=1, limit=4
    $region2: #{rational_kan_forward.3} parent=1 // loop_pre_header
      _
    $region3: #{rational_kan_forward.3} parent=1 // loop_header
      %s14 = sphi 0, %s18
      %p15 = scmp.ge.s32.totalorder %s14, 4
      %s22 = sphi 0, %s22
      %s24 = sphi 0, %s22
      %s25 = sphi 0, %s24
      %s39 = sphi 0, %s25
      %s43 = sphi 0, %s43
      %s45 = sphi 0, %s43
      %s46 = sphi 0, %s45
      %s60 = sphi 0, %s46
      %s64 = sphi 0, %s64
      %s66 = sphi 0, %s64
      %s67 = sphi 0, %s66
      %s81 = sphi 0, %s67
      %s87 = sphi 0, %s89
      %s90 = sphi 0, %s87
      %s91 = sphi 0, %s90
      %s107 = sphi 0, %s91
      %s113 = sphi 0, %s115
      %s116 = sphi 0, %s113
      %s117 = sphi 0, %s116
      %s133 = sphi 0, %s117
    $region4: #{rational_kan_forward.3} parent=1 // loop_header_branch
      %17 = sbr.rel (%p15) target = $region8
    $region5: #{rational_kan_forward.3} parent=1 // loop_body
      %s19 = ssub.s32 %s14, 1
      %s20 = ssub.s32 %s14, 2
      %s21 = sadd.s32 %s14, 1
      %s23 = sadd.s32 %s22, 1
      %p26 = scmp.eq.s32.totalorder %s14, 1
      %p27 = scmp.ne.s32.totalorder %s22, %s24
      %p28 = scmp.eq.s32.totalorder %s14, 0
      %p29 = por %p27, %p28
      %p30 = scmp.ne.s32.totalorder %s22, %s24
      %p31 = scmp.eq.s32.totalorder %s19, 1
      %p32 = por %p30, %p31
      %p33 = scmp.ne.s32.totalorder %s24, %s25
      %p34 = scmp.eq.s32.totalorder %s19, 0
      %p35 = por %p33, %p34
      %p36 = scmp.ne.s32.totalorder %s24, %s25
      %p37 = scmp.eq.s32.totalorder %s20, 1
      %p38 = por %p36, %p37
      %p40 = scmp.ne.s32.totalorder %s25, %s39
      %p41 = scmp.eq.s32.totalorder %s20, 0
      %p42 = por %p40, %p41
      %s44 = sadd.s32 %s43, 1
      %p47 = scmp.eq.s32.totalorder %s14, 1
      %p48 = scmp.ne.s32.totalorder %s43, %s45
      %p49 = scmp.eq.s32.totalorder %s14, 0
      %p50 = por %p48, %p49
      %p51 = scmp.ne.s32.totalorder %s43, %s45
      %p52 = scmp.eq.s32.totalorder %s19, 1
      %p53 = por %p51, %p52
      %p54 = scmp.ne.s32.totalorder %s45, %s46
      %p55 = scmp.eq.s32.totalorder %s19, 0
      %p56 = por %p54, %p55
      %p57 = scmp.ne.s32.totalorder %s45, %s46
      %p58 = scmp.eq.s32.totalorder %s20, 1
      %p59 = por %p57, %p58
      %p61 = scmp.ne.s32.totalorder %s46, %s60
      %p62 = scmp.eq.s32.totalorder %s20, 0
      %p63 = por %p61, %p62
      %s65 = sadd.s32 %s64, 1
      %p68 = scmp.eq.s32.totalorder %s14, 1
      %p69 = scmp.ne.s32.totalorder %s64, %s66
      %p70 = scmp.eq.s32.totalorder %s14, 0
      %p71 = por %p69, %p70
      %p72 = scmp.ne.s32.totalorder %s64, %s66
      %p73 = scmp.eq.s32.totalorder %s19, 1
      %p74 = por %p72, %p73
      %p75 = scmp.ne.s32.totalorder %s66, %s67
      %p76 = scmp.eq.s32.totalorder %s19, 0
      %p77 = por %p75, %p76
      %p78 = scmp.ne.s32.totalorder %s66, %s67
      %p79 = scmp.eq.s32.totalorder %s20, 1
      %p80 = por %p78, %p79
      %p82 = scmp.ne.s32.totalorder %s67, %s81
      %p83 = scmp.eq.s32.totalorder %s20, 0
      %p84 = por %p82, %p83
      %s85 = ssub.s32 %s14, %s21
      %p86 = scmp.eq.s32.totalorder %s85, 0
      %s88 = sadd.s32 %s87, 1
      %s89 = scalar_select %p86, %s87, %s88
      %p92 = pneg %p86
      %p93 = scmp.eq.s32.totalorder %s14, 1
      %p94 = por %p92, %p93
      %p95 = scmp.ne.s32.totalorder %s87, %s90
      %p96 = scmp.eq.s32.totalorder %s14, 0
      %p97 = por %p95, %p96
      %p98 = scmp.ne.s32.totalorder %s87, %s90
      %p99 = scmp.eq.s32.totalorder %s19, 1
      %p100 = por %p98, %p99
      %p101 = scmp.ne.s32.totalorder %s90, %s91
      %p102 = scmp.eq.s32.totalorder %s19, 0
      %p103 = por %p101, %p102
      %p104 = scmp.ne.s32.totalorder %s90, %s91
      %p105 = scmp.eq.s32.totalorder %s20, 1
      %p106 = por %p104, %p105
      %p108 = scmp.ne.s32.totalorder %s91, %s107
      %p109 = scmp.eq.s32.totalorder %s20, 0
      %p110 = por %p108, %p109
      %s111 = ssub.s32 %s14, %s21
      %p112 = scmp.eq.s32.totalorder %s111, 0
      %s114 = sadd.s32 %s113, 1
      %s115 = scalar_select %p112, %s113, %s114
      %p118 = pneg %p112
      %p119 = scmp.eq.s32.totalorder %s14, 1
      %p120 = por %p118, %p119
      %p121 = scmp.ne.s32.totalorder %s113, %s116
      %p122 = scmp.eq.s32.totalorder %s14, 0
      %p123 = por %p121, %p122
      %p124 = scmp.ne.s32.totalorder %s113, %s116
      %p125 = scmp.eq.s32.totalorder %s19, 1
      %p126 = por %p124, %p125
      %p127 = scmp.ne.s32.totalorder %s116, %s117
      %p128 = scmp.eq.s32.totalorder %s19, 0
      %p129 = por %p127, %p128
      %p130 = scmp.ne.s32.totalorder %s116, %s117
      %p131 = scmp.eq.s32.totalorder %s20, 1
      %p132 = por %p130, %p131
      %p134 = scmp.ne.s32.totalorder %s117, %s133
      %p135 = scmp.eq.s32.totalorder %s20, 0
      %p136 = por %p134, %p135
      %p137 = scmp.le.s32.totalorder 1, %s14
      %p138 = scmp.lt.s32.totalorder %s14, 3
      %p139 = pnand %p137, %p138
      %p140 = pneg %p139
      // Predicated region
      $region9: #{rational_kan_forward.3} parent=5 // pred_check
        _
      $region10: #{rational_kan_forward.3} parent=5 // pred_check_branch
        %142 = sbr.rel (%p139) target = $region12
      $region11: #{rational_kan_forward.3} parent=5 // pred_region
        %s143 = ssub.s32 %s14, 1
        // Predicated region
        $region13: #{rational_kan_forward.3} parent=11 // pred_check
          %p144 = pneg %p35
        $region14: #{rational_kan_forward.3} parent=11 // pred_check_branch
          %146 = sbr.rel (%p144) target = $region16
        $region15: #{rational_kan_forward.3} parent=11 // pred_region
          _
        $region16: #{rational_kan_forward.3} parent=11 // pred_fallthru
          _
        // Predicated region
        $region17: #{rational_kan_forward.3} parent=11 // pred_check
          %p147 = pneg %p56
        $region18: #{rational_kan_forward.3} parent=11 // pred_check_branch
          %149 = sbr.rel (%p147) target = $region20
        $region19: #{rational_kan_forward.3} parent=11 // pred_region
          _
        $region20: #{rational_kan_forward.3} parent=11 // pred_fallthru
          _
        // Predicated region
        $region21: #{rational_kan_forward.3} parent=11 // pred_check
          %p150 = pneg %p77
        $region22: #{rational_kan_forward.3} parent=11 // pred_check_branch
          %152 = sbr.rel (%p150) target = $region24
        $region23: #{rational_kan_forward.3} parent=11 // pred_region
          _
        $region24: #{rational_kan_forward.3} parent=11 // pred_fallthru
          _
      $region12: #{rational_kan_forward.3} parent=5 // pred_fallthru
        _
      %p153 = scmp.lt.s32.totalorder %s14, 2
      // Predicated region
      $region25: #{rational_kan_forward.3} parent=5 // pred_check
        %p154 = pneg %p153
      $region26: #{rational_kan_forward.3} parent=5 // pred_check_branch
        %156 = sbr.rel (%p154) target = $region28
      $region27: #{rational_kan_forward.3} parent=5 // pred_region
        // Predicated region
        $region29: #{rational_kan_forward.3} parent=27 // pred_check
          %p157 = pneg %p97
        $region30: #{rational_kan_forward.3} parent=27 // pred_check_branch
          %159 = sbr.rel (%p157) target = $region32
        $region31: #{rational_kan_forward.3} parent=27 // pred_region
          %p160 = scmp.lt.s32.totalorder %s14, 1
          %s161 = scalar_select %p160, %s14, 1
          %s162 = smul.addr %s161, 8
          %s163 = scalar_lea.vmem %s3, %s162
        $region32: #{rational_kan_forward.3} parent=27 // pred_fallthru
          _
      $region28: #{rational_kan_forward.3} parent=5 // pred_fallthru
        _
      %p164 = scmp.le.s32.totalorder 1, %s14
      %p165 = scmp.lt.s32.totalorder %s14, 3
      %p166 = pnand %p164, %p165
      %p167 = pneg %p166
      // Predicated region
      $region33: #{rational_kan_forward.3} parent=5 // pred_check
        _
      $region34: #{rational_kan_forward.3} parent=5 // pred_check_branch
        %169 = sbr.rel (%p166) target = $region36
      $region35: #{rational_kan_forward.3} parent=5 // pred_region
        %s170 = ssub.s32 %s14, 1
        %p171 = pneg %p35
        %p172 = pneg %p32
        %p173 = pneg %p56
        %p174 = pneg %p53
        %p175 = pneg %p77
        %p176 = pneg %p74
        %p177 = scmp.lt.s32.totalorder %s19, 1
        %s178 = scalar_select %p177, %s19, 1
        %s179 = smul.addr %s178, 8
        %s180 = scalar_lea.vmem %s3, %s179
        %p181 = pneg %p103
        %p182 = pneg %p100
        %p183 = pneg %p129
        %p184 = pneg %p126
        %s185 = sand.u32 %s116, 1
        %s186 = scalar_lea.sflag [#allocation4], %s185
        %s187 = sand.u32 %s116, 1
        %s188 = smul.addr %s187, 4
        %s189 = scalar_lea.vmem [#allocation3], %s188
        %p190 = scmp.lt.s32.totalorder %s19, 1
        %s191 = scalar_select %p190, %s19, 1
        %s192 = smul.addr %s191, 8
        %s193 = scalar_lea.vmem %s3, %s192
        %v194 = vld [vmem:[%s193] sm:$0xff]
        %s195 = sld [smem:[#allocation2]]
        %v196 = vstv %s195
        %v197 = vmul.f32 %v194, %v196
        %v198 = vtanh.pop %v197
        %s199 = scalar_lea.vmem %s1, 12
        %v200 = vld [vmem:[%s199] sm:$0xf]
        %v201 = vlaneseq
        %v202 = vshrl.u32 %v201, 7
        %v203 = vsub.s32 0, %v202
        %v204 = vrot.slane %v200, %v203
        %206 = vbcast.lane.b32.xlu0 %v204, 256
        %v207 = vpop.permute.xlu0 %206
        %v208 = vlaneseq
        %v209 = vshrl.u32 %v208, 7
        %v210 = vsub.s32 1, %v209
        %v211 = vrot.slane %v200, %v210
        %213 = vbcast.lane.b32.xlu0 %v211, 256
        %v214 = vpop.permute.xlu0 %213
        %v215 = vlaneseq
        %v216 = vshrl.u32 %v215, 7
        %v217 = vsub.s32 2, %v216
        %v218 = vrot.slane %v200, %v217
        %220 = vbcast.lane.b32.xlu0 %v218, 256
        %v221 = vpop.permute.xlu0 %220
        %v222 = vlaneseq
        %v223 = vshrl.u32 %v222, 7
        %v224 = vsub.s32 3, %v223
        %v225 = vrot.slane %v200, %v224
        %227 = vbcast.lane.b32.xlu0 %v225, 256
        %v228 = vpop.permute.xlu0 %227
        %v229 = vmul.f32 %v207, %v198
        %v230 = vmul.f32 %v214, %v198
        %v231 = vmul.f32 %v221, %v198
        %v232 = vmul.f32 %v228, %v198
        %s233 = scalar_lea.vmem %s1, 8
        %v234 = vld [vmem:[%s233] sm:$0xf]
        %v235 = vlaneseq
        %v236 = vshrl.u32 %v235, 7
        %v237 = vsub.s32 0, %v236
        %v238 = vrot.slane %v234, %v237
        %240 = vbcast.lane.b32.xlu0 %v238, 256
        %v241 = vpop.permute.xlu0 %240
        %v242 = vlaneseq
        %v243 = vshrl.u32 %v242, 7
        %v244 = vsub.s32 1, %v243
        %v245 = vrot.slane %v234, %v244
        %247 = vbcast.lane.b32.xlu0 %v245, 256
        %v248 = vpop.permute.xlu0 %247
        %v249 = vlaneseq
        %v250 = vshrl.u32 %v249, 7
        %v251 = vsub.s32 2, %v250
        %v252 = vrot.slane %v234, %v251
        %254 = vbcast.lane.b32.xlu0 %v252, 256
        %v255 = vpop.permute.xlu0 %254
        %v256 = vlaneseq
        %v257 = vshrl.u32 %v256, 7
        %v258 = vsub.s32 3, %v257
        %v259 = vrot.slane %v234, %v258
        %261 = vbcast.lane.b32.xlu0 %v259, 256
        %v262 = vpop.permute.xlu0 %261
        %v263 = vadd.f32 %v229, %v241
        %v264 = vadd.f32 %v230, %v248
        %v265 = vadd.f32 %v231, %v255
        %v266 = vadd.f32 %v232, %v262
        %v267 = vmul.f32 %v263, %v198
        %v268 = vmul.f32 %v264, %v198
        %v269 = vmul.f32 %v265, %v198
        %v270 = vmul.f32 %v266, %v198
        %s271 = scalar_lea.vmem %s1, 4
        %v272 = vld [vmem:[%s271] sm:$0xf]
        %v273 = vlaneseq
        %v274 = vshrl.u32 %v273, 7
        %v275 = vsub.s32 0, %v274
        %v276 = vrot.slane %v272, %v275
        %278 = vbcast.lane.b32.xlu0 %v276, 256
        %v279 = vpop.permute.xlu0 %278
        %v280 = vlaneseq
        %v281 = vshrl.u32 %v280, 7
        %v282 = vsub.s32 1, %v281
        %v283 = vrot.slane %v272, %v282
        %285 = vbcast.lane.b32.xlu0 %v283, 256
        %v286 = vpop.permute.xlu0 %285
        %v287 = vlaneseq
        %v288 = vshrl.u32 %v287, 7
        %v289 = vsub.s32 2, %v288
        %v290 = vrot.slane %v272, %v289
        %292 = vbcast.lane.b32.xlu0 %v290, 256
        %v293 = vpop.permute.xlu0 %292
        %v294 = vlaneseq
        %v295 = vshrl.u32 %v294, 7
        %v296 = vsub.s32 3, %v295
        %v297 = vrot.slane %v272, %v296
        %299 = vbcast.lane.b32.xlu0 %v297, 256
        %v300 = vpop.permute.xlu0 %299
        %v301 = vadd.f32 %v267, %v279
        %v302 = vadd.f32 %v268, %v286
        %v303 = vadd.f32 %v269, %v293
        %v304 = vadd.f32 %v270, %v300
        %v305 = vmul.f32 %v301, %v198
        %v306 = vmul.f32 %v302, %v198
        %v307 = vmul.f32 %v303, %v198
        %v308 = vmul.f32 %v304, %v198
        %v309 = vld [vmem:[%s1] sm:$0xf]
        %v310 = vlaneseq
        %v311 = vshrl.u32 %v310, 7
        %v312 = vsub.s32 0, %v311
        %v313 = vrot.slane %v309, %v312
        %315 = vbcast.lane.b32.xlu0 %v313, 256
        %v316 = vpop.permute.xlu0 %315
        %v317 = vlaneseq
        %v318 = vshrl.u32 %v317, 7
        %v319 = vsub.s32 1, %v318
        %v320 = vrot.slane %v309, %v319
        %322 = vbcast.lane.b32.xlu0 %v320, 256
        %v323 = vpop.permute.xlu0 %322
        %v324 = vlaneseq
        %v325 = vshrl.u32 %v324, 7
        %v326 = vsub.s32 2, %v325
        %v327 = vrot.slane %v309, %v326
        %329 = vbcast.lane.b32.xlu0 %v327, 256
        %v330 = vpop.permute.xlu0 %329
        %v331 = vlaneseq
        %v332 = vshrl.u32 %v331, 7
        %v333 = vsub.s32 3, %v332
        %v334 = vrot.slane %v309, %v333
        %336 = vbcast.lane.b32.xlu0 %v334, 256
        %v337 = vpop.permute.xlu0 %336
        %v338 = vadd.f32 %v305, %v316
        %v339 = vadd.f32 %v306, %v323
        %v340 = vadd.f32 %v307, %v330
        %v341 = vadd.f32 %v308, %v337
        %s342 = scalar_lea.vmem %s2, 4
        %v343 = vld [vmem:[%s342] sm:$0xf]
        %v344 = vlaneseq
        %v345 = vshrl.u32 %v344, 7
        %v346 = vsub.s32 0, %v345
        %v347 = vrot.slane %v343, %v346
        %349 = vbcast.lane.b32.xlu0 %v347, 256
        %v350 = vpop.permute.xlu0 %349
        %v351 = vlaneseq
        %v352 = vshrl.u32 %v351, 7
        %v353 = vsub.s32 1, %v352
        %v354 = vrot.slane %v343, %v353
        %356 = vbcast.lane.b32.xlu0 %v354, 256
        %v357 = vpop.permute.xlu0 %356
        %v358 = vlaneseq
        %v359 = vshrl.u32 %v358, 7
        %v360 = vsub.s32 2, %v359
        %v361 = vrot.slane %v343, %v360
        %363 = vbcast.lane.b32.xlu0 %v361, 256
        %v364 = vpop.permute.xlu0 %363
        %v365 = vlaneseq
        %v366 = vshrl.u32 %v365, 7
        %v367 = vsub.s32 3, %v366
        %v368 = vrot.slane %v343, %v367
        %370 = vbcast.lane.b32.xlu0 %v368, 256
        %v371 = vpop.permute.xlu0 %370
        %v372 = vmul.f32 %v350, %v198
        %v373 = vmul.f32 %v357, %v198
        %v374 = vmul.f32 %v364, %v198
        %v375 = vmul.f32 %v371, %v198
        %v376 = vld [vmem:[%s2] sm:$0xf]
        %v377 = vlaneseq
        %v378 = vshrl.u32 %v377, 7
        %v379 = vsub.s32 0, %v378
        %v380 = vrot.slane %v376, %v379
        %382 = vbcast.lane.b32.xlu0 %v380, 256
        %v383 = vpop.permute.xlu0 %382
        %v384 = vlaneseq
        %v385 = vshrl.u32 %v384, 7
        %v386 = vsub.s32 1, %v385
        %v387 = vrot.slane %v376, %v386
        %389 = vbcast.lane.b32.xlu0 %v387, 256
        %v390 = vpop.permute.xlu0 %389
        %v391 = vlaneseq
        %v392 = vshrl.u32 %v391, 7
        %v393 = vsub.s32 2, %v392
        %v394 = vrot.slane %v376, %v393
        %396 = vbcast.lane.b32.xlu0 %v394, 256
        %v397 = vpop.permute.xlu0 %396
        %v398 = vlaneseq
        %v399 = vshrl.u32 %v398, 7
        %v400 = vsub.s32 3, %v399
        %v401 = vrot.slane %v376, %v400
        %403 = vbcast.lane.b32.xlu0 %v401, 256
        %v404 = vpop.permute.xlu0 %403
        %v405 = vadd.f32 %v372, %v383
        %v406 = vadd.f32 %v373, %v390
        %v407 = vadd.f32 %v374, %v397
        %v408 = vadd.f32 %v375, %v404
        %v409 = vmul.f32 %v405, %v198
        %v410 = vmul.f32 %v406, %v198
        %v411 = vmul.f32 %v407, %v198
        %v412 = vmul.f32 %v408, %v198
        %v413 = vmul.f32 %v409, %v194
        %v414 = vmul.f32 %v410, %v194
        %v415 = vmul.f32 %v411, %v194
        %v416 = vmul.f32 %v412, %v194
        %v417 = vand.u32 2147483647, %v413
        %v418 = vand.u32 2147483647, %v414
        %v419 = vand.u32 2147483647, %v415
        %v420 = vand.u32 2147483647, %v416
        %v421 = vadd.f32 %v417, 1.0
        %v422 = vadd.f32 %v418, 1.0
        %v423 = vadd.f32 %v419, 1.0
        %v424 = vadd.f32 %v420, 1.0
        %v425 = vrcp.pop %v421
        %v426 = vrcp.pop %v422
        %v427 = vrcp.pop %v423
        %v428 = vrcp.pop %v424
        %v429 = vmul.f32 %v421, %v425
        %v430 = vmul.f32 %v422, %v426
        %v431 = vmul.f32 %v423, %v427
        %v432 = vmul.f32 %v424, %v428
        %v433 = vsub.f32 2.0, %v429
        %v434 = vsub.f32 2.0, %v430
        %v435 = vsub.f32 2.0, %v431
        %v436 = vsub.f32 2.0, %v432
        %v437 = vmul.f32 %v425, %v433
        %v438 = vmul.f32 %v426, %v434
        %v439 = vmul.f32 %v427, %v435
        %v440 = vmul.f32 %v428, %v436
        %v441 = vmul.f32 %v338, %v437
        %v442 = vmul.f32 %v339, %v438
        %v443 = vmul.f32 %v340, %v439
        %v444 = vmul.f32 %v341, %v440
        %v445 = vrot.slane %v441, 4
        %v446 = vadd.f32 %v441, %v445
        %v447 = vrot.slane %v446, 2
        %v448 = vadd.f32 %v446, %v447
        %v449 = vrot.slane %v448, 1
        %v450 = vadd.f32 %v448, %v449
        %v451 = vrot.slane %v442, 4
        %v452 = vadd.f32 %v442, %v451
        %v453 = vrot.slane %v452, 2
        %v454 = vadd.f32 %v452, %v453
        %v455 = vrot.slane %v454, 1
        %v456 = vadd.f32 %v454, %v455
        %v457 = vrot.slane %v443, 4
        %v458 = vadd.f32 %v443, %v457
        %v459 = vrot.slane %v458, 2
        %v460 = vadd.f32 %v458, %v459
        %v461 = vrot.slane %v460, 1
        %v462 = vadd.f32 %v460, %v461
        %v463 = vrot.slane %v444, 4
        %v464 = vadd.f32 %v444, %v463
        %v465 = vrot.slane %v464, 2
        %v466 = vadd.f32 %v464, %v465
        %v467 = vrot.slane %v466, 1
        %v468 = vadd.f32 %v466, %v467
        %vm473 = vcmask 1041409
        %v474 = vsel %vm473, %v456, %v450
        %vm475 = vcmask 1042434
        %v476 = vsel %vm475, %v462, %v474
        %vm477 = vcmask 1043459
        %v478 = vsel %vm477, %v468, %v476
        %480 = vst [vmem:[%s189] sm:$0xf] %v478
        %s481 = sand.u32 %s116, 1
        %s482 = scalar_lea.sflag [#allocation4], %s481
        %s483 = sand.u32 %s116, 1
        %s484 = smul.addr %s483, 4
        %s485 = scalar_lea.vmem [#allocation3], %s484
        // Predicated region
        $region37: #{rational_kan_forward.3} parent=35 // pred_check
          %p486 = pneg %p126
        $region38: #{rational_kan_forward.3} parent=35 // pred_check_branch
          %488 = sbr.rel (%p486) target = $region40
        $region39: #{rational_kan_forward.3} parent=35 // pred_region
          %s490 = ssub.s32 64, 64
          %491 = vsyncadd %s482, %s490
          %s492 = smul.addr %s19, 64
          %s493 = scalar_lea.hbm %s4, %s492
          %s495 = sshll.u32 %s485, 4
          %s496 = int_to_ptr.vmem [resolvable:$true] %s495
          %498 = dma.vmem_to_hbm [thread:$0]  %s496, 64, %s493, %s482
        $region40: #{rational_kan_forward.3} parent=35 // pred_fallthru
          _
      $region36: #{rational_kan_forward.3} parent=5 // pred_fallthru
        _
      %p499 = scmp.le.s32.totalorder 2, %s14
      // Predicated region
      $region41: #{rational_kan_forward.3} parent=5 // pred_check
        %p500 = pneg %p499
      $region42: #{rational_kan_forward.3} parent=5 // pred_check_branch
        %502 = sbr.rel (%p500) target = $region44
      $region43: #{rational_kan_forward.3} parent=5 // pred_region
        %s503 = ssub.s32 %s14, 2
        // Predicated region
        $region45: #{rational_kan_forward.3} parent=43 // pred_check
          %p504 = pneg %p132
        $region46: #{rational_kan_forward.3} parent=43 // pred_check_branch
          %506 = sbr.rel (%p504) target = $region48
        $region47: #{rational_kan_forward.3} parent=43 // pred_region
          %s507 = sand.u32 %s117, 1
          %s508 = scalar_lea.sflag [#allocation4], %s507
          %s509 = sand.u32 %s117, 1
          %s510 = smul.addr %s509, 4
          %s511 = scalar_lea.vmem [#allocation3], %s510
          %512 = dma.done %s508, 64
        $region48: #{rational_kan_forward.3} parent=43 // pred_fallthru
          _
      $region44: #{rational_kan_forward.3} parent=5 // pred_fallthru
        _
    $region6: #{rational_kan_forward.3} parent=1 // loop_footer
      %s18 = sadd.s32 1, %s14
    $region7: #{rational_kan_forward.3} parent=1 // loop_footer_branch
      %13 = sbr.rel target = $region3
    $region8: #{rational_kan_forward.3} parent=1 // loop_exit
      _
    %513 = vsyncpa [#allocation4], 1
    %s514 = scalar_lea.sflag [#allocation4], 1
    %515 = vsyncpa %s514, 1

// kernel: rational_kan_forward.2
$region0: #{rational_kan_forward.2}
  #allocation0 [shape = 'u32[]', space=smem, size = 0x4, offset = 0x4, fixed_abs, tag = 'smem constant byte address 0x4 - core index']
  #allocation1 [shape = 'u32[144,128]{1,0:T(1,128)}', space=vmem, size = 0x12000, scoped, tag = 'internal scratch']
  #allocation2 [shape = 'f32[1]{0:T(128)S(6)}', space=smem, size = 0x200, scoped, tag = 'scoped memory for rational_kan_forward.2']
  %s0 = inlined_call_operand.<no memory space> [shape: f32[1], index: 0, kind: input, shape index: {}]
  %s1 = inlined_call_operand.vmem [shape: f32[4,8,16], index: 1, kind: input, shape index: {}]
  %s2 = inlined_call_operand.vmem [shape: f32[2,8,16], index: 2, kind: input, shape index: {}]
  %s3 = inlined_call_operand.vmem [shape: f32[16,256], index: 3, kind: input, shape index: {}]
  %s4 = inlined_call_operand.vmem [shape: f32[8,256], index: 4, kind: output, shape index: {}]
  %s5 = sld [smem:[#allocation0]]
  $region87: #{rational_kan_forward.2} parent=0
    _
  %s7 = ssub.s32 1, %s5
  %s8 = scalar_select 0, %s7, %s5
  %9 = sst [smem:[#allocation2]] %s0
  $region1: #{rational_kan_forward.2} parent=0
    #allocation3 [shape = 'u8[16384]{0}', space=vmem, size = 0x4000, scoped, tag = 'input window, operand 3']
    loop: start=0, step=1, limit=4
    $region2: #{rational_kan_forward.2} parent=1 // loop_pre_header
      _
    $region3: #{rational_kan_forward.2} parent=1 // loop_header
      %s11 = sphi 0, %s15
      %p12 = scmp.ge.s32.totalorder %s11, 4
      %s19 = sphi 0, %s19
      %s21 = sphi 0, %s19
      %s22 = sphi 0, %s21
      %s36 = sphi 0, %s22
      %s40 = sphi 0, %s40
      %s42 = sphi 0, %s40
      %s43 = sphi 0, %s42
      %s57 = sphi 0, %s43
      %s61 = sphi 0, %s61
      %s63 = sphi 0, %s61
      %s64 = sphi 0, %s63
      %s78 = sphi 0, %s64
      %s84 = sphi 0, %s86
      %s87 = sphi 0, %s84
      %s88 = sphi 0, %s87
      %s104 = sphi 0, %s88
      %s110 = sphi 0, %s112
      %s113 = sphi 0, %s110
      %s114 = sphi 0, %s113
      %s130 = sphi 0, %s114
    $region4: #{rational_kan_forward.2} parent=1 // loop_header_branch
      %14 = sbr.rel (%p12) target = $region8
    $region5: #{rational_kan_forward.2} parent=1 // loop_body
      %s16 = ssub.s32 %s11, 1
      %s17 = ssub.s32 %s11, 2
      %s18 = sadd.s32 %s11, 1
      %s20 = sadd.s32 %s19, 1
      %p23 = scmp.eq.s32.totalorder %s11, 1
      %p24 = scmp.ne.s32.totalorder %s19, %s21
      %p25 = scmp.eq.s32.totalorder %s11, 0
      %p26 = por %p24, %p25
      %p27 = scmp.ne.s32.totalorder %s19, %s21
      %p28 = scmp.eq.s32.totalorder %s16, 1
      %p29 = por %p27, %p28
      %p30 = scmp.ne.s32.totalorder %s21, %s22
      %p31 = scmp.eq.s32.totalorder %s16, 0
      %p32 = por %p30, %p31
      %p33 = scmp.ne.s32.totalorder %s21, %s22
      %p34 = scmp.eq.s32.totalorder %s17, 1
      %p35 = por %p33, %p34
      %p37 = scmp.ne.s32.totalorder %s22, %s36
      %p38 = scmp.eq.s32.totalorder %s17, 0
      %p39 = por %p37, %p38
      %s41 = sadd.s32 %s40, 1
      %p44 = scmp.eq.s32.totalorder %s11, 1
      %p45 = scmp.ne.s32.totalorder %s40, %s42
      %p46 = scmp.eq.s32.totalorder %s11, 0
      %p47 = por %p45, %p46
      %p48 = scmp.ne.s32.totalorder %s40, %s42
      %p49 = scmp.eq.s32.totalorder %s16, 1
      %p50 = por %p48, %p49
      %p51 = scmp.ne.s32.totalorder %s42, %s43
      %p52 = scmp.eq.s32.totalorder %s16, 0
      %p53 = por %p51, %p52
      %p54 = scmp.ne.s32.totalorder %s42, %s43
      %p55 = scmp.eq.s32.totalorder %s17, 1
      %p56 = por %p54, %p55
      %p58 = scmp.ne.s32.totalorder %s43, %s57
      %p59 = scmp.eq.s32.totalorder %s17, 0
      %p60 = por %p58, %p59
      %s62 = sadd.s32 %s61, 1
      %p65 = scmp.eq.s32.totalorder %s11, 1
      %p66 = scmp.ne.s32.totalorder %s61, %s63
      %p67 = scmp.eq.s32.totalorder %s11, 0
      %p68 = por %p66, %p67
      %p69 = scmp.ne.s32.totalorder %s61, %s63
      %p70 = scmp.eq.s32.totalorder %s16, 1
      %p71 = por %p69, %p70
      %p72 = scmp.ne.s32.totalorder %s63, %s64
      %p73 = scmp.eq.s32.totalorder %s16, 0
      %p74 = por %p72, %p73
      %p75 = scmp.ne.s32.totalorder %s63, %s64
      %p76 = scmp.eq.s32.totalorder %s17, 1
      %p77 = por %p75, %p76
      %p79 = scmp.ne.s32.totalorder %s64, %s78
      %p80 = scmp.eq.s32.totalorder %s17, 0
      %p81 = por %p79, %p80
      %s82 = ssub.s32 %s11, %s18
      %p83 = scmp.eq.s32.totalorder %s82, 0
      %s85 = sadd.s32 %s84, 1
      %s86 = scalar_select %p83, %s84, %s85
      %p89 = pneg %p83
      %p90 = scmp.eq.s32.totalorder %s11, 1
      %p91 = por %p89, %p90
      %p92 = scmp.ne.s32.totalorder %s84, %s87
      %p93 = scmp.eq.s32.totalorder %s11, 0
      %p94 = por %p92, %p93
      %p95 = scmp.ne.s32.totalorder %s84, %s87
      %p96 = scmp.eq.s32.totalorder %s16, 1
      %p97 = por %p95, %p96
      %p98 = scmp.ne.s32.totalorder %s87, %s88
      %p99 = scmp.eq.s32.totalorder %s16, 0
      %p100 = por %p98, %p99
      %p101 = scmp.ne.s32.totalorder %s87, %s88
      %p102 = scmp.eq.s32.totalorder %s17, 1
      %p103 = por %p101, %p102
      %p105 = scmp.ne.s32.totalorder %s88, %s104
      %p106 = scmp.eq.s32.totalorder %s17, 0
      %p107 = por %p105, %p106
      %s108 = ssub.s32 %s11, %s18
      %p109 = scmp.eq.s32.totalorder %s108, 0
      %s111 = sadd.s32 %s110, 1
      %s112 = scalar_select %p109, %s110, %s111
      %p115 = pneg %p109
      %p116 = scmp.eq.s32.totalorder %s11, 1
      %p117 = por %p115, %p116
      %p118 = scmp.ne.s32.totalorder %s110, %s113
      %p119 = scmp.eq.s32.totalorder %s11, 0
      %p120 = por %p118, %p119
      %p121 = scmp.ne.s32.totalorder %s110, %s113
      %p122 = scmp.eq.s32.totalorder %s16, 1
      %p123 = por %p121, %p122
      %p124 = scmp.ne.s32.totalorder %s113, %s114
      %p125 = scmp.eq.s32.totalorder %s16, 0
      %p126 = por %p124, %p125
      %p127 = scmp.ne.s32.totalorder %s113, %s114
      %p128 = scmp.eq.s32.totalorder %s17, 1
      %p129 = por %p127, %p128
      %p131 = scmp.ne.s32.totalorder %s114, %s130
      %p132 = scmp.eq.s32.totalorder %s17, 0
      %p133 = por %p131, %p132
      %p134 = scmp.le.s32.totalorder 1, %s11
      %p135 = scmp.lt.s32.totalorder %s11, 3
      %p136 = pnand %p134, %p135
      %p137 = pneg %p136
      // Predicated region
      $region9: #{rational_kan_forward.2} parent=5 // pred_check
        _
      $region10: #{rational_kan_forward.2} parent=5 // pred_check_branch
        %139 = sbr.rel (%p136) target = $region12
      $region11: #{rational_kan_forward.2} parent=5 // pred_region
        %s140 = ssub.s32 %s11, 1
        // Predicated region
        $region13: #{rational_kan_forward.2} parent=11 // pred_check
          %p141 = pneg %p32
        $region14: #{rational_kan_forward.2} parent=11 // pred_check_branch
          %143 = sbr.rel (%p141) target = $region16
        $region15: #{rational_kan_forward.2} parent=11 // pred_region
          _
        $region16: #{rational_kan_forward.2} parent=11 // pred_fallthru
          _
        // Predicated region
        $region17: #{rational_kan_forward.2} parent=11 // pred_check
          %p144 = pneg %p53
        $region18: #{rational_kan_forward.2} parent=11 // pred_check_branch
          %146 = sbr.rel (%p144) target = $region20
        $region19: #{rational_kan_forward.2} parent=11 // pred_region
          _
        $region20: #{rational_kan_forward.2} parent=11 // pred_fallthru
          _
        // Predicated region
        $region21: #{rational_kan_forward.2} parent=11 // pred_check
          %p147 = pneg %p74
        $region22: #{rational_kan_forward.2} parent=11 // pred_check_branch
          %149 = sbr.rel (%p147) target = $region24
        $region23: #{rational_kan_forward.2} parent=11 // pred_region
          _
        $region24: #{rational_kan_forward.2} parent=11 // pred_fallthru
          _
      $region12: #{rational_kan_forward.2} parent=5 // pred_fallthru
        _
      %p150 = scmp.lt.s32.totalorder %s11, 2
      // Predicated region
      $region25: #{rational_kan_forward.2} parent=5 // pred_check
        %p151 = pneg %p150
      $region26: #{rational_kan_forward.2} parent=5 // pred_check_branch
        %153 = sbr.rel (%p151) target = $region28
      $region27: #{rational_kan_forward.2} parent=5 // pred_region
        // Predicated region
        $region29: #{rational_kan_forward.2} parent=27 // pred_check
          %p154 = pneg %p94
        $region30: #{rational_kan_forward.2} parent=27 // pred_check_branch
          %156 = sbr.rel (%p154) target = $region32
        $region31: #{rational_kan_forward.2} parent=27 // pred_region
          %s157 = sand.u32 %s84, 1
          %s158 = sand.u32 %s84, 1
          %s159 = smul.addr %s158, 16
          %s160 = scalar_lea.vmem [#allocation3], %s159
          %s161 = smul.addr %s11, 8
          %s162 = scalar_lea.vmem %s3, %s161
          // Predicated region
          $region33: #{rational_kan_forward.2} parent=31 // pred_check
            _
          $region34: #{rational_kan_forward.2} parent=31 // pred_check_branch
            %164 = sbr.rel (0) target = $region36
          $region35: #{rational_kan_forward.2} parent=31 // pred_region
            // Predicated region
            $region37: #{rational_kan_forward.2} parent=35 // pred_check
              _
            $region38: #{rational_kan_forward.2} parent=35 // pred_check_branch
              %166 = sbr.rel (0) target = $region40
            $region39: #{rational_kan_forward.2} parent=35 // pred_region
              // Predicated region
              $region52: #{rational_kan_forward.2} parent=39 // pred_check
                _
              $region53: #{rational_kan_forward.2} parent=39 // pred_check_branch
                %184 = sbr.rel (0) target = $region55
              $region54: #{rational_kan_forward.2} parent=39 // pred_region
                loop: start=0, step=1, limit=1
                $region56: #{rational_kan_forward.2} parent=54 // loop_pre_header
                  _
                $region57: #{rational_kan_forward.2} parent=54 // loop_header
                  %s186 = sphi 0, %s190
                  %p187 = scmp.ge.s32.totalorder %s186, 1
                  %s191 = sphi %s162, %s162
                  %s192 = sphi %s160, %s160
                $region58: #{rational_kan_forward.2} parent=54 // loop_header_branch
                  %189 = sbr.rel (%p187) target = $region62
                $region59: #{rational_kan_forward.2} parent=54 // loop_body
                  %v193 = vld [vmem:[%s191] sm:$0xff]
                  %194 = vst [vmem:[%s192] sm:$0xff] %v193
                  %v195 = vld [vmem:[%s191 + $0x10] sm:$0xff]
                  %196 = vst [vmem:[%s192 + $0x8] sm:$0xff] %v195
                $region60: #{rational_kan_forward.2} parent=54 // loop_footer
                  %s190 = sadd.s32 1, %s186
                $region61: #{rational_kan_forward.2} parent=54 // loop_footer_branch
                  %185 = sbr.rel target = $region57
                $region62: #{rational_kan_forward.2} parent=54 // loop_exit
                  _
              $region55: #{rational_kan_forward.2} parent=39 // pred_fallthru
                _
              // Predicated region
              $region63: #{rational_kan_forward.2} parent=39 // pred_check
                _
              $region64: #{rational_kan_forward.2} parent=39 // pred_check_branch
                %198 = sbr.rel target = $region66
              $region65: #{rational_kan_forward.2} parent=39 // pred_region
                _
              $region66: #{rational_kan_forward.2} parent=39 // pred_fallthru
                _
            $region40: #{rational_kan_forward.2} parent=35 // pred_fallthru
              _
            // Predicated region
            $region41: #{rational_kan_forward.2} parent=35 // pred_check
              _
            $region42: #{rational_kan_forward.2} parent=35 // pred_check_branch
              %168 = sbr.rel target = $region44
            $region43: #{rational_kan_forward.2} parent=35 // pred_region
              %s170 = ssub.s32 256, 1
              loop: start=0, step=1, limit=1
              $region45: #{rational_kan_forward.2} parent=43 // loop_pre_header
                _
              $region46: #{rational_kan_forward.2} parent=43 // loop_header
                %s172 = sphi 0, %s176
                %p173 = scmp.ge.s32.totalorder %s172, 1
                %s177 = sphi %s162, %s162
                %s178 = sphi %s160, %s160
              $region47: #{rational_kan_forward.2} parent=43 // loop_header_branch
                %175 = sbr.rel (%p173) target = $region51
              $region48: #{rational_kan_forward.2} parent=43 // loop_body
                %v179 = vld [vmem:[%s177] sm:%s170]
                %180 = vst [vmem:[%s178] sm:%s170] %v179
                %v181 = vld [vmem:[%s177 + $0x10] sm:%s170]
                %182 = vst [vmem:[%s178 + $0x8] sm:%s170] %v181
              $region49: #{rational_kan_forward.2} parent=43 // loop_footer
                %s176 = sadd.s32 1, %s172
              $region50: #{rational_kan_forward.2} parent=43 // loop_footer_branch
                %171 = sbr.rel target = $region46
              $region51: #{rational_kan_forward.2} parent=43 // loop_exit
                _
            $region44: #{rational_kan_forward.2} parent=35 // pred_fallthru
              _
          $region36: #{rational_kan_forward.2} parent=31 // pred_fallthru
            _
          %199 = vnop
        $region32: #{rational_kan_forward.2} parent=27 // pred_fallthru
          _
      $region28: #{rational_kan_forward.2} parent=5 // pred_fallthru
        _
      %p200 = scmp.le.s32.totalorder 1, %s11
      %p201 = scmp.lt.s32.totalorder %s11, 3
      %p202 = pnand %p200, %p201
      %p203 = pneg %p202
      // Predicated region
      $region67: #{rational_kan_forward.2} parent=5 // pred_check
        _
      $region68: #{rational_kan_forward.2} parent=5 // pred_check_branch
        %205 = sbr.rel (%p202) target = $region70
      $region69: #{rational_kan_forward.2} parent=5 // pred_region
        %s206 = ssub.s32 %s11, 1
        %s207 = sand.u32 %s87, 1
        %s208 = sand.u32 %s87, 1
        %s209 = smul.addr %s208, 16
        %s210 = scalar_lea.vmem [#allocation3], %s209
        // Predicated region
        $region71: #{rational_kan_forward.2} parent=69 // pred_check
          %p211 = pneg %p100
        $region72: #{rational_kan_forward.2} parent=69 // pred_check_branch
          %213 = sbr.rel (%p211) target = $region74
        $region73: #{rational_kan_forward.2} parent=69 // pred_region
          _
        $region74: #{rational_kan_forward.2} parent=69 // pred_fallthru
          _
        %p214 = pneg %p32
        %p215 = pneg %p29
        %p216 = pneg %p53
        %p217 = pneg %p50
        %p218 = pneg %p74
        %p219 = pneg %p71
        %s220 = sand.u32 %s87, 1
        %s221 = sand.u32 %s87, 1
        %s222 = smul.addr %s221, 16
        %s223 = scalar_lea.vmem [#allocation3], %s222
        %p224 = pneg %p100
        %p225 = pneg %p97
        %p226 = pneg %p126
        %p227 = pneg %p123
        %p228 = scmp.lt.s32.totalorder %s16, 1
        %s229 = scalar_select %p228, %s16, 1
        %s230 = smul.addr %s229, 8
        %s231 = scalar_lea.vmem %s4, %s230
        %p232 = scmp.lt.s32.totalorder %s16, 1
        %s233 = scalar_select %p232, %s16, 1
        %s234 = smul.addr %s233, 8
        %s235 = scalar_lea.vmem %s4, %s234
        %v236 = vld [vmem:[%s210] sm:$0xff]
        %v237 = vld [vmem:[%s210 + $0x8] sm:$0xff]
        %s238 = sld [smem:[#allocation2]]
        %v239 = vstv %s238
        %v240 = vmul.f32 %v236, %v239
        %v241 = vmul.f32 %v237, %v239
        %v242 = vtanh.pop %v240
        %v243 = vtanh.pop %v241
        %s244 = scalar_lea.vmem %s1, 24
        %v245 = vld [vmem:[%s244] sm:$0xff]
        %v246 = vlaneseq
        %v247 = vshrl.u32 %v246, 7
        %v248 = vsub.s32 0, %v247
        %v249 = vrot.slane %v245, %v248
        %251 = vbcast.lane.b32.xlu0 %v249, 256
        %v252 = vpop.permute.xlu0 %251
        %s254 = sor.u32 256, 8
        %255 = vbcast.lane.b32.xlu0 %v249, %s254
        %v256 = vpop.permute.xlu0 %255
        %v257 = vlaneseq
        %v258 = vshrl.u32 %v257, 7
        %v259 = vsub.s32 1, %v258
        %v260 = vrot.slane %v245, %v259
        %262 = vbcast.lane.b32.xlu0 %v260, 256
        %v263 = vpop.permute.xlu0 %262
        %s265 = sor.u32 256, 8
        %266 = vbcast.lane.b32.xlu0 %v260, %s265
        %v267 = vpop.permute.xlu0 %266
        %v268 = vlaneseq
        %v269 = vshrl.u32 %v268, 7
        %v270 = vsub.s32 2, %v269
        %v271 = vrot.slane %v245, %v270
        %273 = vbcast.lane.b32.xlu0 %v271, 256
        %v274 = vpop.permute.xlu0 %273
        %s276 = sor.u32 256, 8
        %277 = vbcast.lane.b32.xlu0 %v271, %s276
        %v278 = vpop.permute.xlu0 %277
        %v279 = vlaneseq
        %v280 = vshrl.u32 %v279, 7
        %v281 = vsub.s32 3, %v280
        %v282 = vrot.slane %v245, %v281
        %284 = vbcast.lane.b32.xlu0 %v282, 256
        %v285 = vpop.permute.xlu0 %284
        %s287 = sor.u32 256, 8
        %288 = vbcast.lane.b32.xlu0 %v282, %s287
        %v289 = vpop.permute.xlu0 %288
        %v290 = vlaneseq
        %v291 = vshrl.u32 %v290, 7
        %v292 = vsub.s32 4, %v291
        %v293 = vrot.slane %v245, %v292
        %295 = vbcast.lane.b32.xlu0 %v293, 256
        %v296 = vpop.permute.xlu0 %295
        %s298 = sor.u32 256, 8
        %299 = vbcast.lane.b32.xlu0 %v293, %s298
        %v300 = vpop.permute.xlu0 %299
        %v301 = vlaneseq
        %v302 = vshrl.u32 %v301, 7
        %v303 = vsub.s32 5, %v302
        %v304 = vrot.slane %v245, %v303
        %306 = vbcast.lane.b32.xlu0 %v304, 256
        %v307 = vpop.permute.xlu0 %306
        %s309 = sor.u32 256, 8
        %310 = vbcast.lane.b32.xlu0 %v304, %s309
        %v311 = vpop.permute.xlu0 %310
        %v312 = vlaneseq
        %v313 = vshrl.u32 %v312, 7
        %v314 = vsub.s32 6, %v313
        %v315 = vrot.slane %v245, %v314
        %317 = vbcast.lane.b32.xlu0 %v315, 256
        %v318 = vpop.permute.xlu0 %317
        %s320 = sor.u32 256, 8
        %321 = vbcast.lane.b32.xlu0 %v315, %s320
        %v322 = vpop.permute.xlu0 %321
        %v323 = vlaneseq
        %v324 = vshrl.u32 %v323, 7
        %v325 = vsub.s32 7, %v324
        %v326 = vrot.slane %v245, %v325
        %328 = vbcast.lane.b32.xlu0 %v326, 256
        %v329 = vpop.permute.xlu0 %328
        %s331 = sor.u32 256, 8
        %332 = vbcast.lane.b32.xlu0 %v326, %s331
        %v333 = vpop.permute.xlu0 %332
        %v334 = vmul.f32 %v252, %v242
        %v335 = vmul.f32 %v256, %v243
        %v336 = vmul.f32 %v263, %v242
        %v337 = vmul.f32 %v267, %v243
        %v338 = vmul.f32 %v274, %v242
        %v339 = vmul.f32 %v278, %v243
        %v340 = vmul.f32 %v285, %v242
        %v341 = vmul.f32 %v289, %v243
        %v342 = vmul.f32 %v296, %v242
        %v343 = vmul.f32 %v300, %v243
        %v344 = vmul.f32 %v307, %v242
        %v345 = vmul.f32 %v311, %v243
        %v346 = vmul.f32 %v318, %v242
        %v347 = vmul.f32 %v322, %v243
        %v348 = vmul.f32 %v329, %v242
        %v349 = vmul.f32 %v333, %v243
        %s350 = scalar_lea.vmem %s1, 16
        %v351 = vld [vmem:[%s350] sm:$0xff]
        %v352 = vlaneseq
        %v353 = vshrl.u32 %v352, 7
        %v354 = vsub.s32 0, %v353
        %v355 = vrot.slane %v351, %v354
        %357 = vbcast.lane.b32.xlu0 %v355, 256
        %v358 = vpop.permute.xlu0 %357
        %s360 = sor.u32 256, 8
        %361 = vbcast.lane.b32.xlu0 %v355, %s360
        %v362 = vpop.permute.xlu0 %361
        %v363 = vlaneseq
        %v364 = vshrl.u32 %v363, 7
        %v365 = vsub.s32 1, %v364
        %v366 = vrot.slane %v351, %v365
        %368 = vbcast.lane.b32.xlu0 %v366, 256
        %v369 = vpop.permute.xlu0 %368
        %s371 = sor.u32 256, 8
        %372 = vbcast.lane.b32.xlu0 %v366, %s371
        %v373 = vpop.permute.xlu0 %372
        %v374 = vlaneseq
        %v375 = vshrl.u32 %v374, 7
        %v376 = vsub.s32 2, %v375
        %v377 = vrot.slane %v351, %v376
        %379 = vbcast.lane.b32.xlu0 %v377, 256
        %v380 = vpop.permute.xlu0 %379
        %s382 = sor.u32 256, 8
        %383 = vbcast.lane.b32.xlu0 %v377, %s382
        %v384 = vpop.permute.xlu0 %383
        %v385 = vlaneseq
        %v386 = vshrl.u32 %v385, 7
        %v387 = vsub.s32 3, %v386
        %v388 = vrot.slane %v351, %v387
        %390 = vbcast.lane.b32.xlu0 %v388, 256
        %v391 = vpop.permute.xlu0 %390
        %s393 = sor.u32 256, 8
        %394 = vbcast.lane.b32.xlu0 %v388, %s393
        %v395 = vpop.permute.xlu0 %394
        %v396 = vlaneseq
        %v397 = vshrl.u32 %v396, 7
        %v398 = vsub.s32 4, %v397
        %v399 = vrot.slane %v351, %v398
        %401 = vbcast.lane.b32.xlu0 %v399, 256
        %v402 = vpop.permute.xlu0 %401
        %s404 = sor.u32 256, 8
        %405 = vbcast.lane.b32.xlu0 %v399, %s404
        %v406 = vpop.permute.xlu0 %405
        %v407 = vlaneseq
        %v408 = vshrl.u32 %v407, 7
        %v409 = vsub.s32 5, %v408
        %v410 = vrot.slane %v351, %v409
        %412 = vbcast.lane.b32.xlu0 %v410, 256
        %v413 = vpop.permute.xlu0 %412
        %s415 = sor.u32 256, 8
        %416 = vbcast.lane.b32.xlu0 %v410, %s415
        %v417 = vpop.permute.xlu0 %416
        %v418 = vlaneseq
        %v419 = vshrl.u32 %v418, 7
        %v420 = vsub.s32 6, %v419
        %v421 = vrot.slane %v351, %v420
        %423 = vbcast.lane.b32.xlu0 %v421, 256
        %v424 = vpop.permute.xlu0 %423
        %s426 = sor.u32 256, 8
        %427 = vbcast.lane.b32.xlu0 %v421, %s426
        %v428 = vpop.permute.xlu0 %427
        %v429 = vlaneseq
        %v430 = vshrl.u32 %v429, 7
        %v431 = vsub.s32 7, %v430
        %v432 = vrot.slane %v351, %v431
        %434 = vbcast.lane.b32.xlu0 %v432, 256
        %v435 = vpop.permute.xlu0 %434
        %s437 = sor.u32 256, 8
        %438 = vbcast.lane.b32.xlu0 %v432, %s437
        %v439 = vpop.permute.xlu0 %438
        %v440 = vadd.f32 %v334, %v358
        %v441 = vadd.f32 %v335, %v362
        %v442 = vadd.f32 %v336, %v369
        %v443 = vadd.f32 %v337, %v373
        %v444 = vadd.f32 %v338, %v380
        %v445 = vadd.f32 %v339, %v384
        %v446 = vadd.f32 %v340, %v391
        %v447 = vadd.f32 %v341, %v395
        %v448 = vadd.f32 %v342, %v402
        %v449 = vadd.f32 %v343, %v406
        %v450 = vadd.f32 %v344, %v413
        %v451 = vadd.f32 %v345, %v417
        %v452 = vadd.f32 %v346, %v424
        %v453 = vadd.f32 %v347, %v428
        %v454 = vadd.f32 %v348, %v435
        %v455 = vadd.f32 %v349, %v439
        %v456 = vmul.f32 %v440, %v242
        %v457 = vmul.f32 %v441, %v243
        %v458 = vmul.f32 %v442, %v242
        %v459 = vmul.f32 %v443, %v243
        %v460 = vmul.f32 %v444, %v242
        %v461 = vmul.f32 %v445, %v243
        %v462 = vmul.f32 %v446, %v242
        %v463 = vmul.f32 %v447, %v243
        %v464 = vmul.f32 %v448, %v242
        %v465 = vmul.f32 %v449, %v243
        %v466 = vmul.f32 %v450, %v242
        %v467 = vmul.f32 %v451, %v243
        %v468 = vmul.f32 %v452, %v242
        %v469 = vmul.f32 %v453, %v243
        %v470 = vmul.f32 %v454, %v242
        %v471 = vmul.f32 %v455, %v243
        %s472 = scalar_lea.vmem %s1, 8
        %v473 = vld [vmem:[%s472] sm:$0xff]
        %v474 = vlaneseq
        %v475 = vshrl.u32 %v474, 7
        %v476 = vsub.s32 0, %v475
        %v477 = vrot.slane %v473, %v476
        %479 = vbcast.lane.b32.xlu0 %v477, 256
        %v480 = vpop.permute.xlu0 %479
        %s482 = sor.u32 256, 8
        %483 = vbcast.lane.b32.xlu0 %v477, %s482
        %v484 = vpop.permute.xlu0 %483
        %v485 = vlaneseq
        %v486 = vshrl.u32 %v485, 7
        %v487 = vsub.s32 1, %v486
        %v488 = vrot.slane %v473, %v487
        %490 = vbcast.lane.b32.xlu0 %v488, 256
        %v491 = vpop.permute.xlu0 %490
        %s493 = sor.u32 256, 8
        %494 = vbcast.lane.b32.xlu0 %v488, %s493
        %v495 = vpop.permute.xlu0 %494
        %v496 = vlaneseq
        %v497 = vshrl.u32 %v496, 7
        %v498 = vsub.s32 2, %v497
        %v499 = vrot.slane %v473, %v498
        %501 = vbcast.lane.b32.xlu0 %v499, 256
        %v502 = vpop.permute.xlu0 %501
        %s504 = sor.u32 256, 8
        %505 = vbcast.lane.b32.xlu0 %v499, %s504
        %v506 = vpop.permute.xlu0 %505
        %v507 = vlaneseq
        %v508 = vshrl.u32 %v507, 7
        %v509 = vsub.s32 3, %v508
        %v510 = vrot.slane %v473, %v509
        %512 = vbcast.lane.b32.xlu0 %v510, 256
        %v513 = vpop.permute.xlu0 %512
        %s515 = sor.u32 256, 8
        %516 = vbcast.lane.b32.xlu0 %v510, %s515
        %v517 = vpop.permute.xlu0 %516
        %v518 = vlaneseq
        %v519 = vshrl.u32 %v518, 7
        %v520 = vsub.s32 4, %v519
        %v521 = vrot.slane %v473, %v520
        %523 = vbcast.lane.b32.xlu0 %v521, 256
        %v524 = vpop.permute.xlu0 %523
        %s526 = sor.u32 256, 8
        %527 = vbcast.lane.b32.xlu0 %v521, %s526
        %v528 = vpop.permute.xlu0 %527
        %v529 = vlaneseq
        %v530 = vshrl.u32 %v529, 7
        %v531 = vsub.s32 5, %v530
        %v532 = vrot.slane %v473, %v531
        %534 = vbcast.lane.b32.xlu0 %v532, 256
        %v535 = vpop.permute.xlu0 %534
        %s537 = sor.u32 256, 8
        %538 = vbcast.lane.b32.xlu0 %v532, %s537
        %v539 = vpop.permute.xlu0 %538
        %v540 = vlaneseq
        %v541 = vshrl.u32 %v540, 7
        %v542 = vsub.s32 6, %v541
        %v543 = vrot.slane %v473, %v542
        %545 = vbcast.lane.b32.xlu0 %v543, 256
        %v546 = vpop.permute.xlu0 %545
        %s548 = sor.u32 256, 8
        %549 = vbcast.lane.b32.xlu0 %v543, %s548
        %v550 = vpop.permute.xlu0 %549
        %v551 = vlaneseq
        %v552 = vshrl.u32 %v551, 7
        %v553 = vsub.s32 7, %v552
        %v554 = vrot.slane %v473, %v553
        %556 = vbcast.lane.b32.xlu0 %v554, 256
        %v557 = vpop.permute.xlu0 %556
        %s559 = sor.u32 256, 8
        %560 = vbcast.lane.b32.xlu0 %v554, %s559
        %v561 = vpop.permute.xlu0 %560
        %v562 = vadd.f32 %v456, %v480
        %v563 = vadd.f32 %v457, %v484
        %v564 = vadd.f32 %v458, %v491
        %v565 = vadd.f32 %v459, %v495
        %v566 = vadd.f32 %v460, %v502
        %v567 = vadd.f32 %v461, %v506
        %v568 = vadd.f32 %v462, %v513
        %v569 = vadd.f32 %v463, %v517
        %v570 = vadd.f32 %v464, %v524
        %v571 = vadd.f32 %v465, %v528
        %v572 = vadd.f32 %v466, %v535
        %v573 = vadd.f32 %v467, %v539
        %v574 = vadd.f32 %v468, %v546
        %v575 = vadd.f32 %v469, %v550
        %v576 = vadd.f32 %v470, %v557
        %v577 = vadd.f32 %v471, %v561
        %v578 = vmul.f32 %v562, %v242
        %v579 = vmul.f32 %v563, %v243
        %v580 = vmul.f32 %v564, %v242
        %v581 = vmul.f32 %v565, %v243
        %v582 = vmul.f32 %v566, %v242
        %v583 = vmul.f32 %v567, %v243
        %v584 = vmul.f32 %v568, %v242
        %v585 = vmul.f32 %v569, %v243
        %v586 = vmul.f32 %v570, %v242
        %v587 = vmul.f32 %v571, %v243
        %v588 = vmul.f32 %v572, %v242
        %v589 = vmul.f32 %v573, %v243
        %v590 = vmul.f32 %v574, %v242
        %v591 = vmul.f32 %v575, %v243
        %v592 = vmul.f32 %v576, %v242
        %v593 = vmul.f32 %v577, %v243
        %v594 = vld [vmem:[%s1] sm:$0xff]
        %v595 = vlaneseq
        %v596 = vshrl.u32 %v595, 7
        %v597 = vsub.s32 0, %v596
        %v598 = vrot.slane %v594, %v597
        %600 = vbcast.lane.b32.xlu0 %v598, 256
        %v601 = vpop.permute.xlu0 %600
        %s603 = sor.u32 256, 8
        %604 = vbcast.lane.b32.xlu0 %v598, %s603
        %v605 = vpop.permute.xlu0 %604
        %v606 = vlaneseq
        %v607 = vshrl.u32 %v606, 7
        %v608 = vsub.s32 1, %v607
        %v609 = vrot.slane %v594, %v608
        %611 = vbcast.lane.b32.xlu0 %v609, 256
        %v612 = vpop.permute.xlu0 %611
        %s614 = sor.u32 256, 8
        %615 = vbcast.lane.b32.xlu0 %v609, %s614
        %v616 = vpop.permute.xlu0 %615
        %v617 = vlaneseq
        %v618 = vshrl.u32 %v617, 7
        %v619 = vsub.s32 2, %v618
        %v620 = vrot.slane %v594, %v619
        %622 = vbcast.lane.b32.xlu0 %v620, 256
        %v623 = vpop.permute.xlu0 %622
        %s625 = sor.u32 256, 8
        %626 = vbcast.lane.b32.xlu0 %v620, %s625
        %v627 = vpop.permute.xlu0 %626
        %v628 = vlaneseq
        %v629 = vshrl.u32 %v628, 7
        %v630 = vsub.s32 3, %v629
        %v631 = vrot.slane %v594, %v630
        %633 = vbcast.lane.b32.xlu0 %v631, 256
        %v634 = vpop.permute.xlu0 %633
        %s636 = sor.u32 256, 8
        %637 = vbcast.lane.b32.xlu0 %v631, %s636
        %v638 = vpop.permute.xlu0 %637
        %v639 = vlaneseq
        %v640 = vshrl.u32 %v639, 7
        %v641 = vsub.s32 4, %v640
        %v642 = vrot.slane %v594, %v641
        %644 = vbcast.lane.b32.xlu0 %v642, 256
        %v645 = vpop.permute.xlu0 %644
        %s647 = sor.u32 256, 8
        %648 = vbcast.lane.b32.xlu0 %v642, %s647
        %v649 = vpop.permute.xlu0 %648
        %v650 = vlaneseq
        %v651 = vshrl.u32 %v650, 7
        %v652 = vsub.s32 5, %v651
        %v653 = vrot.slane %v594, %v652
        %655 = vbcast.lane.b32.xlu0 %v653, 256
        %v656 = vpop.permute.xlu0 %655
        %s658 = sor.u32 256, 8
        %659 = vbcast.lane.b32.xlu0 %v653, %s658
        %v660 = vpop.permute.xlu0 %659
        %v661 = vlaneseq
        %v662 = vshrl.u32 %v661, 7
        %v663 = vsub.s32 6, %v662
        %v664 = vrot.slane %v594, %v663
        %666 = vbcast.lane.b32.xlu0 %v664, 256
        %v667 = vpop.permute.xlu0 %666
        %s669 = sor.u32 256, 8
        %670 = vbcast.lane.b32.xlu0 %v664, %s669
        %v671 = vpop.permute.xlu0 %670
        %v672 = vlaneseq
        %v673 = vshrl.u32 %v672, 7
        %v674 = vsub.s32 7, %v673
        %v675 = vrot.slane %v594, %v674
        %677 = vbcast.lane.b32.xlu0 %v675, 256
        %v678 = vpop.permute.xlu0 %677
        %s680 = sor.u32 256, 8
        %681 = vbcast.lane.b32.xlu0 %v675, %s680
        %v682 = vpop.permute.xlu0 %681
        %v683 = vadd.f32 %v578, %v601
        %v684 = vadd.f32 %v579, %v605
        %v685 = vadd.f32 %v580, %v612
        %v686 = vadd.f32 %v581, %v616
        %v687 = vadd.f32 %v582, %v623
        %v688 = vadd.f32 %v583, %v627
        %v689 = vadd.f32 %v584, %v634
        %v690 = vadd.f32 %v585, %v638
        %v691 = vadd.f32 %v586, %v645
        %v692 = vadd.f32 %v587, %v649
        %v693 = vadd.f32 %v588, %v656
        %v694 = vadd.f32 %v589, %v660
        %v695 = vadd.f32 %v590, %v667
        %v696 = vadd.f32 %v591, %v671
        %v697 = vadd.f32 %v592, %v678
        %v698 = vadd.f32 %v593, %v682
        %s699 = scalar_lea.vmem %s2, 8
        %v700 = vld [vmem:[%s699] sm:$0xff]
        %v701 = vlaneseq
        %v702 = vshrl.u32 %v701, 7
        %v703 = vsub.s32 0, %v702
        %v704 = vrot.slane %v700, %v703
        %706 = vbcast.lane.b32.xlu0 %v704, 256
        %v707 = vpop.permute.xlu0 %706
        %s709 = sor.u32 256, 8
        %710 = vbcast.lane.b32.xlu0 %v704, %s709
        %v711 = vpop.permute.xlu0 %710
        %v712 = vlaneseq
        %v713 = vshrl.u32 %v712, 7
        %v714 = vsub.s32 1, %v713
        %v715 = vrot.slane %v700, %v714
        %717 = vbcast.lane.b32.xlu0 %v715, 256
        %v718 = vpop.permute.xlu0 %717
        %s720 = sor.u32 256, 8
        %721 = vbcast.lane.b32.xlu0 %v715, %s720
        %v722 = vpop.permute.xlu0 %721
        %v723 = vlaneseq
        %v724 = vshrl.u32 %v723, 7
        %v725 = vsub.s32 2, %v724
        %v726 = vrot.slane %v700, %v725
        %728 = vbcast.lane.b32.xlu0 %v726, 256
        %v729 = vpop.permute.xlu0 %728
        %s731 = sor.u32 256, 8
        %732 = vbcast.lane.b32.xlu0 %v726, %s731
        %v733 = vpop.permute.xlu0 %732
        %v734 = vlaneseq
        %v735 = vshrl.u32 %v734, 7
        %v736 = vsub.s32 3, %v735
        %v737 = vrot.slane %v700, %v736
        %739 = vbcast.lane.b32.xlu0 %v737, 256
        %v740 = vpop.permute.xlu0 %739
        %s742 = sor.u32 256, 8
        %743 = vbcast.lane.b32.xlu0 %v737, %s742
        %v744 = vpop.permute.xlu0 %743
        %v745 = vlaneseq
        %v746 = vshrl.u32 %v745, 7
        %v747 = vsub.s32 4, %v746
        %v748 = vrot.slane %v700, %v747
        %750 = vbcast.lane.b32.xlu0 %v748, 256
        %v751 = vpop.permute.xlu0 %750
        %s753 = sor.u32 256, 8
        %754 = vbcast.lane.b32.xlu0 %v748, %s753
        %v755 = vpop.permute.xlu0 %754
        %v756 = vlaneseq
        %v757 = vshrl.u32 %v756, 7
        %v758 = vsub.s32 5, %v757
        %v759 = vrot.slane %v700, %v758
        %761 = vbcast.lane.b32.xlu0 %v759, 256
        %v762 = vpop.permute.xlu0 %761
        %s764 = sor.u32 256, 8
        %765 = vbcast.lane.b32.xlu0 %v759, %s764
        %v766 = vpop.permute.xlu0 %765
        %v767 = vlaneseq
        %v768 = vshrl.u32 %v767, 7
        %v769 = vsub.s32 6, %v768
        %v770 = vrot.slane %v700, %v769
        %772 = vbcast.lane.b32.xlu0 %v770, 256
        %v773 = vpop.permute.xlu0 %772
        %s775 = sor.u32 256, 8
        %776 = vbcast.lane.b32.xlu0 %v770, %s775
        %v777 = vpop.permute.xlu0 %776
        %v778 = vlaneseq
        %v779 = vshrl.u32 %v778, 7
        %v780 = vsub.s32 7, %v779
        %v781 = vrot.slane %v700, %v780
        %783 = vbcast.lane.b32.xlu0 %v781, 256
        %v784 = vpop.permute.xlu0 %783
        %s786 = sor.u32 256, 8
        %787 = vbcast.lane.b32.xlu0 %v781, %s786
        %v788 = vpop.permute.xlu0 %787
        %v789 = vmul.f32 %v707, %v242
        %v790 = vmul.f32 %v711, %v243
        %v791 = vmul.f32 %v718, %v242
        %v792 = vmul.f32 %v722, %v243
        %v793 = vmul.f32 %v729, %v242
        %v794 = vmul.f32 %v733, %v243
        %v795 = vmul.f32 %v740, %v242
        %v796 = vmul.f32 %v744, %v243
        %v797 = vmul.f32 %v751, %v242
        %v798 = vmul.f32 %v755, %v243
        %v799 = vmul.f32 %v762, %v242
        %v800 = vmul.f32 %v766, %v243
        %v801 = vmul.f32 %v773, %v242
        %v802 = vmul.f32 %v777, %v243
        %v803 = vmul.f32 %v784, %v242
        %v804 = vmul.f32 %v788, %v243
        %v805 = vld [vmem:[%s2] sm:$0xff]
        %v806 = vlaneseq
        %v807 = vshrl.u32 %v806, 7
        %v808 = vsub.s32 0, %v807
        %v809 = vrot.slane %v805, %v808
        %811 = vbcast.lane.b32.xlu0 %v809, 256
        %v812 = vpop.permute.xlu0 %811
        %s814 = sor.u32 256, 8
        %815 = vbcast.lane.b32.xlu0 %v809, %s814
        %v816 = vpop.permute.xlu0 %815
        %v817 = vlaneseq
        %v818 = vshrl.u32 %v817, 7
        %v819 = vsub.s32 1, %v818
        %v820 = vrot.slane %v805, %v819
        %822 = vbcast.lane.b32.xlu0 %v820, 256
        %v823 = vpop.permute.xlu0 %822
        %s825 = sor.u32 256, 8
        %826 = vbcast.lane.b32.xlu0 %v820, %s825
        %v827 = vpop.permute.xlu0 %826
        %v828 = vlaneseq
        %v829 = vshrl.u32 %v828, 7
        %v830 = vsub.s32 2, %v829
        %v831 = vrot.slane %v805, %v830
        %833 = vbcast.lane.b32.xlu0 %v831, 256
        %v834 = vpop.permute.xlu0 %833
        %s836 = sor.u32 256, 8
        %837 = vbcast.lane.b32.xlu0 %v831, %s836
        %v838 = vpop.permute.xlu0 %837
        %v839 = vlaneseq
        %v840 = vshrl.u32 %v839, 7
        %v841 = vsub.s32 3, %v840
        %v842 = vrot.slane %v805, %v841
        %844 = vbcast.lane.b32.xlu0 %v842, 256
        %v845 = vpop.permute.xlu0 %844
        %s847 = sor.u32 256, 8
        %848 = vbcast.lane.b32.xlu0 %v842, %s847
        %v849 = vpop.permute.xlu0 %848
        %v850 = vlaneseq
        %v851 = vshrl.u32 %v850, 7
        %v852 = vsub.s32 4, %v851
        %v853 = vrot.slane %v805, %v852
        %855 = vbcast.lane.b32.xlu0 %v853, 256
        %v856 = vpop.permute.xlu0 %855
        %s858 = sor.u32 256, 8
        %859 = vbcast.lane.b32.xlu0 %v853, %s858
        %v860 = vpop.permute.xlu0 %859
        %v861 = vlaneseq
        %v862 = vshrl.u32 %v861, 7
        %v863 = vsub.s32 5, %v862
        %v864 = vrot.slane %v805, %v863
        %866 = vbcast.lane.b32.xlu0 %v864, 256
        %v867 = vpop.permute.xlu0 %866
        %s869 = sor.u32 256, 8
        %870 = vbcast.lane.b32.xlu0 %v864, %s869
        %v871 = vpop.permute.xlu0 %870
        %v872 = vlaneseq
        %v873 = vshrl.u32 %v872, 7
        %v874 = vsub.s32 6, %v873
        %v875 = vrot.slane %v805, %v874
        %877 = vbcast.lane.b32.xlu0 %v875, 256
        %v878 = vpop.permute.xlu0 %877
        %s880 = sor.u32 256, 8
        %881 = vbcast.lane.b32.xlu0 %v875, %s880
        %v882 = vpop.permute.xlu0 %881
        %v883 = vlaneseq
        %v884 = vshrl.u32 %v883, 7
        %v885 = vsub.s32 7, %v884
        %v886 = vrot.slane %v805, %v885
        %888 = vbcast.lane.b32.xlu0 %v886, 256
        %v889 = vpop.permute.xlu0 %888
        %s891 = sor.u32 256, 8
        %892 = vbcast.lane.b32.xlu0 %v886, %s891
        %v893 = vpop.permute.xlu0 %892
        %v894 = vadd.f32 %v789, %v812
        %v895 = vadd.f32 %v790, %v816
        %v896 = vadd.f32 %v791, %v823
        %v897 = vadd.f32 %v792, %v827
        %v898 = vadd.f32 %v793, %v834
        %v899 = vadd.f32 %v794, %v838
        %v900 = vadd.f32 %v795, %v845
        %v901 = vadd.f32 %v796, %v849
        %v902 = vadd.f32 %v797, %v856
        %v903 = vadd.f32 %v798, %v860
        %v904 = vadd.f32 %v799, %v867
        %v905 = vadd.f32 %v800, %v871
        %v906 = vadd.f32 %v801, %v878
        %v907 = vadd.f32 %v802, %v882
        %v908 = vadd.f32 %v803, %v889
        %v909 = vadd.f32 %v804, %v893
        %v910 = vmul.f32 %v894, %v242
        %v911 = vmul.f32 %v895, %v243
        %v912 = vmul.f32 %v896, %v242
        %v913 = vmul.f32 %v897, %v243
        %v914 = vmul.f32 %v898, %v242
        %v915 = vmul.f32 %v899, %v243
        %v916 = vmul.f32 %v900, %v242
        %v917 = vmul.f32 %v901, %v243
        %v918 = vmul.f32 %v902, %v242
        %v919 = vmul.f32 %v903, %v243
        %v920 = vmul.f32 %v904, %v242
        %v921 = vmul.f32 %v905, %v243
        %v922 = vmul.f32 %v906, %v242
        %v923 = vmul.f32 %v907, %v243
        %v924 = vmul.f32 %v908, %v242
        %v925 = vmul.f32 %v909, %v243
        %v926 = vmul.f32 %v910, %v236
        %v927 = vmul.f32 %v911, %v237
        %v928 = vmul.f32 %v912, %v236
        %v929 = vmul.f32 %v913, %v237
        %v930 = vmul.f32 %v914, %v236
        %v931 = vmul.f32 %v915, %v237
        %v932 = vmul.f32 %v916, %v236
        %v933 = vmul.f32 %v917, %v237
        %v934 = vmul.f32 %v918, %v236
        %v935 = vmul.f32 %v919, %v237
        %v936 = vmul.f32 %v920, %v236
        %v937 = vmul.f32 %v921, %v237
        %v938 = vmul.f32 %v922, %v236
        %v939 = vmul.f32 %v923, %v237
        %v940 = vmul.f32 %v924, %v236
        %v941 = vmul.f32 %v925, %v237
        %v942 = vand.u32 2147483647, %v926
        %v943 = vand.u32 2147483647, %v927
        %v944 = vand.u32 2147483647, %v928
        %v945 = vand.u32 2147483647, %v929
        %v946 = vand.u32 2147483647, %v930
        %v947 = vand.u32 2147483647, %v931
        %v948 = vand.u32 2147483647, %v932
        %v949 = vand.u32 2147483647, %v933
        %v950 = vand.u32 2147483647, %v934
        %v951 = vand.u32 2147483647, %v935
        %v952 = vand.u32 2147483647, %v936
        %v953 = vand.u32 2147483647, %v937
        %v954 = vand.u32 2147483647, %v938
        %v955 = vand.u32 2147483647, %v939
        %v956 = vand.u32 2147483647, %v940
        %v957 = vand.u32 2147483647, %v941
        %v958 = vadd.f32 %v942, 1.0
        %v959 = vadd.f32 %v943, 1.0
        %v960 = vadd.f32 %v944, 1.0
        %v961 = vadd.f32 %v945, 1.0
        %v962 = vadd.f32 %v946, 1.0
        %v963 = vadd.f32 %v947, 1.0
        %v964 = vadd.f32 %v948, 1.0
        %v965 = vadd.f32 %v949, 1.0
        %v966 = vadd.f32 %v950, 1.0
        %v967 = vadd.f32 %v951, 1.0
        %v968 = vadd.f32 %v952, 1.0
        %v969 = vadd.f32 %v953, 1.0
        %v970 = vadd.f32 %v954, 1.0
        %v971 = vadd.f32 %v955, 1.0
        %v972 = vadd.f32 %v956, 1.0
        %v973 = vadd.f32 %v957, 1.0
        %v974 = vrcp.pop %v958
        %v975 = vrcp.pop %v959
        %v976 = vrcp.pop %v960
        %v977 = vrcp.pop %v961
        %v978 = vrcp.pop %v962
        %v979 = vrcp.pop %v963
        %v980 = vrcp.pop %v964
        %v981 = vrcp.pop %v965
        %v982 = vrcp.pop %v966
        %v983 = vrcp.pop %v967
        %v984 = vrcp.pop %v968
        %v985 = vrcp.pop %v969
        %v986 = vrcp.pop %v970
        %v987 = vrcp.pop %v971
        %v988 = vrcp.pop %v972
        %v989 = vrcp.pop %v973
        %v990 = vmul.f32 %v958, %v974
        %v991 = vmul.f32 %v959, %v975
        %v992 = vmul.f32 %v960, %v976
        %v993 = vmul.f32 %v961, %v977
        %v994 = vmul.f32 %v962, %v978
        %v995 = vmul.f32 %v963, %v979
        %v996 = vmul.f32 %v964, %v980
        %v997 = vmul.f32 %v965, %v981
        %v998 = vmul.f32 %v966, %v982
        %v999 = vmul.f32 %v967, %v983
        %v1000 = vmul.f32 %v968, %v984
        %v1001 = vmul.f32 %v969, %v985
        %v1002 = vmul.f32 %v970, %v986
        %v1003 = vmul.f32 %v971, %v987
        %v1004 = vmul.f32 %v972, %v988
        %v1005 = vmul.f32 %v973, %v989
        %v1006 = vsub.f32 2.0, %v990
        %v1007 = vsub.f32 2.0, %v991
        %v1008 = vsub.f32 2.0, %v992
        %v1009 = vsub.f32 2.0, %v993
        %v1010 = vsub.f32 2.0, %v994
        %v1011 = vsub.f32 2.0, %v995
        %v1012 = vsub.f32 2.0, %v996
        %v1013 = vsub.f32 2.0, %v997
        %v1014 = vsub.f32 2.0, %v998
        %v1015 = vsub.f32 2.0, %v999
        %v1016 = vsub.f32 2.0, %v1000
        %v1017 = vsub.f32 2.0, %v1001
        %v1018 = vsub.f32 2.0, %v1002
        %v1019 = vsub.f32 2.0, %v1003
        %v1020 = vsub.f32 2.0, %v1004
        %v1021 = vsub.f32 2.0, %v1005
        %v1022 = vmul.f32 %v974, %v1006
        %v1023 = vmul.f32 %v975, %v1007
        %v1024 = vmul.f32 %v976, %v1008
        %v1025 = vmul.f32 %v977, %v1009
        %v1026 = vmul.f32 %v978, %v1010
        %v1027 = vmul.f32 %v979, %v1011
        %v1028 = vmul.f32 %v980, %v1012
        %v1029 = vmul.f32 %v981, %v1013
        %v1030 = vmul.f32 %v982, %v1014
        %v1031 = vmul.f32 %v983, %v1015
        %v1032 = vmul.f32 %v984, %v1016
        %v1033 = vmul.f32 %v985, %v1017
        %v1034 = vmul.f32 %v986, %v1018
        %v1035 = vmul.f32 %v987, %v1019
        %v1036 = vmul.f32 %v988, %v1020
        %v1037 = vmul.f32 %v989, %v1021
        %v1038 = vmul.f32 %v683, %v1022
        %v1039 = vmul.f32 %v684, %v1023
        %v1040 = vmul.f32 %v685, %v1024
        %v1041 = vmul.f32 %v686, %v1025
        %v1042 = vmul.f32 %v687, %v1026
        %v1043 = vmul.f32 %v688, %v1027
        %v1044 = vmul.f32 %v689, %v1028
        %v1045 = vmul.f32 %v690, %v1029
        %v1046 = vmul.f32 %v691, %v1030
        %v1047 = vmul.f32 %v692, %v1031
        %v1048 = vmul.f32 %v693, %v1032
        %v1049 = vmul.f32 %v694, %v1033
        %v1050 = vmul.f32 %v695, %v1034
        %v1051 = vmul.f32 %v696, %v1035
        %v1052 = vmul.f32 %v697, %v1036
        %v1053 = vmul.f32 %v698, %v1037
        %v1054 = vadd.f32 %v1038, %v1039
        %v1055 = vrot.slane %v1054, 4
        %v1056 = vadd.f32 %v1054, %v1055
        %v1057 = vrot.slane %v1056, 2
        %v1058 = vadd.f32 %v1056, %v1057
        %v1059 = vrot.slane %v1058, 1
        %v1060 = vadd.f32 %v1058, %v1059
        %v1061 = vadd.f32 %v1040, %v1041
        %v1062 = vrot.slane %v1061, 4
        %v1063 = vadd.f32 %v1061, %v1062
        %v1064 = vrot.slane %v1063, 2
        %v1065 = vadd.f32 %v1063, %v1064
        %v1066 = vrot.slane %v1065, 1
        %v1067 = vadd.f32 %v1065, %v1066
        %v1068 = vadd.f32 %v1042, %v1043
        %v1069 = vrot.slane %v1068, 4
        %v1070 = vadd.f32 %v1068, %v1069
        %v1071 = vrot.slane %v1070, 2
        %v1072 = vadd.f32 %v1070, %v1071
        %v1073 = vrot.slane %v1072, 1
        %v1074 = vadd.f32 %v1072, %v1073
        %v1075 = vadd.f32 %v1044, %v1045
        %v1076 = vrot.slane %v1075, 4
        %v1077 = vadd.f32 %v1075, %v1076
        %v1078 = vrot.slane %v1077, 2
        %v1079 = vadd.f32 %v1077, %v1078
        %v1080 = vrot.slane %v1079, 1
        %v1081 = vadd.f32 %v1079, %v1080
        %v1082 = vadd.f32 %v1046, %v1047
        %v1083 = vrot.slane %v1082, 4
        %v1084 = vadd.f32 %v1082, %v1083
        %v1085 = vrot.slane %v1084, 2
        %v1086 = vadd.f32 %v1084, %v1085
        %v1087 = vrot.slane %v1086, 1
        %v1088 = vadd.f32 %v1086, %v1087
        %v1089 = vadd.f32 %v1048, %v1049
        %v1090 = vrot.slane %v1089, 4
        %v1091 = vadd.f32 %v1089, %v1090
        %v1092 = vrot.slane %v1091, 2
        %v1093 = vadd.f32 %v1091, %v1092
        %v1094 = vrot.slane %v1093, 1
        %v1095 = vadd.f32 %v1093, %v1094
        %v1096 = vadd.f32 %v1050, %v1051
        %v1097 = vrot.slane %v1096, 4
        %v1098 = vadd.f32 %v1096, %v1097
        %v1099 = vrot.slane %v1098, 2
        %v1100 = vadd.f32 %v1098, %v1099
        %v1101 = vrot.slane %v1100, 1
        %v1102 = vadd.f32 %v1100, %v1101
        %v1103 = vadd.f32 %v1052, %v1053
        %v1104 = vrot.slane %v1103, 4
        %v1105 = vadd.f32 %v1103, %v1104
        %v1106 = vrot.slane %v1105, 2
        %v1107 = vadd.f32 %v1105, %v1106
        %v1108 = vrot.slane %v1107, 1
        %v1109 = vadd.f32 %v1107, %v1108
        %vm1118 = vcmask 1041409
        %v1119 = vsel %vm1118, %v1067, %v1060
        %vm1120 = vcmask 1042434
        %v1121 = vsel %vm1120, %v1074, %v1119
        %vm1122 = vcmask 1043459
        %v1123 = vsel %vm1122, %v1081, %v1121
        %vm1124 = vcmask 1044484
        %v1125 = vsel %vm1124, %v1088, %v1123
        %vm1126 = vcmask 1045509
        %v1127 = vsel %vm1126, %v1095, %v1125
        %vm1128 = vcmask 1046534
        %v1129 = vsel %vm1128, %v1102, %v1127
        %vm1130 = vcmask 1047559
        %v1131 = vsel %vm1130, %v1109, %v1129
        %1133 = vst [vmem:[%s235] sm:$0xff] %v1131
        %p1134 = scmp.lt.s32.totalorder %s16, 1
        %s1135 = scalar_select %p1134, %s16, 1
        %s1136 = smul.addr %s1135, 8
        %s1137 = scalar_lea.vmem %s4, %s1136
        // Predicated region
        $region75: #{rational_kan_forward.2} parent=69 // pred_check
          %p1138 = pneg %p123
        $region76: #{rational_kan_forward.2} parent=69 // pred_check_branch
          %1140 = sbr.rel (%p1138) target = $region78
        $region77: #{rational_kan_forward.2} parent=69 // pred_region
          _
        $region78: #{rational_kan_forward.2} parent=69 // pred_fallthru
          _
      $region70: #{rational_kan_forward.2} parent=5 // pred_fallthru
        _
      %p1141 = scmp.le.s32.totalorder 2, %s11
      // Predicated region
      $region79: #{rational_kan_forward.2} parent=5 // pred_check
        %p1142 = pneg %p1141
      $region80: #{rational_kan_forward.2} parent=5 // pred_check_branch
        %1144 = sbr.rel (%p1142) target = $region82
      $region81: #{rational_kan_forward.2} parent=5 // pred_region
        %s1145 = ssub.s32 %s11, 2
        // Predicated region
        $region83: #{rational_kan_forward.2} parent=81 // pred_check
          %p1146 = pneg %p129
        $region84: #{rational_kan_forward.2} parent=81 // pred_check_branch
          %1148 = sbr.rel (%p1146) target = $region86
        $region85: #{rational_kan_forward.2} parent=81 // pred_region
          %p1149 = scmp.lt.s32.totalorder %s17, 1
          %s1150 = scalar_select %p1149, %s17, 1
          %s1151 = smul.addr %s1150, 8
          %s1152 = scalar_lea.vmem %s4, %s1151
        $region86: #{rational_kan_forward.2} parent=81 // pred_fallthru
          _
      $region82: #{rational_kan_forward.2} parent=5 // pred_fallthru
        _
    $region6: #{rational_kan_forward.2} parent=1 // loop_footer
      %s15 = sadd.s32 1, %s11
    $region7: #{rational_kan_forward.2} parent=1 // loop_footer_branch
      %10 = sbr.rel target = $region3
    $region8: #{rational_kan_forward.2} parent=1 // loop_exit
      _

</llo_original>
